<compile_context>
chip_gen: v7x
topology: tpu7x:2x2x1
jax: 0.10.0
libtpu: 0.0.40
codegen_flags: <defaults>
</compile_context>

<pallas_src>
import jax
import jax.numpy as jnp
from jax import lax
from jax.experimental import pallas as pl
from jax.experimental.pallas import tpu as pltpu


def _choose_batch_tile(B, tb_max):
    """Pick the batch tile (rows per grid step)."""
    tb_max = max(128, (tb_max // 128) * 128)
    # Tiny batches: one block equal to the full array dims (always layout-legal).
    if B <= min(tb_max, 512):
        return B
    # Large batches: tile must be a multiple of 128 (lane-dense z tail masking
    # + sublane alignment), >= 512 rows (>=85% of HBM roofline), and sized so
    # the grid has >= 4 steps when B allows (>= 2 per TC on dual-TC chips).
    tb = max(512, -(-B // 4))      # ceil(B / 4), floored at 512 rows
    tb = min(tb, tb_max)
    return ((tb + 127) // 128) * 128


def _gru_gate_kernel(x1_ref, x2_ref, w1_ref, ws1_ref, ws2_ref, y_ref, z_ref):
    x1 = x1_ref[...]                 # (TB, 128) f32
    x2 = x2_ref[...]                 # (TB, 128) f32
    w1 = w1_ref[...]                 # (128, 128) f32, torch (out, in) layout
    ws1 = ws1_ref[...]               # (1, 128)
    ws2 = ws2_ref[...]               # (1, 128)

    # x @ W1^T with no host-side transpose: contract x's lane dim with w1's
    # "in" dim.  Two independent MXU calls (no concat/slice: those materialize
    # extra VMEM traffic and enlarge live ranges; MXU has huge slack here).
    dn = (((1,), (1,)), ((), ()))
    h1 = jnp.tanh(lax.dot_general(x1, w1, dn, preferred_element_type=jnp.float32))
    h2 = jnp.tanh(lax.dot_general(x2, w1, dn, preferred_element_type=jnp.float32))
    # TODO(synk): on v5e (single f32 EUP, no bf16 path) the 2*TB*128 tanh per
    # step can overtake the HBM time at large TB; profile and swap in a VPU
    # polynomial approximation there if the EUP slot binds.

    # Gate z, column form (TB, 1) for the per-row blend: two cheap XLU lane
    # reductions (concat-free hidden_sigmoid on the pre-split weight halves).
    logit_col = (jnp.sum(h1 * ws1, axis=-1, keepdims=True)
                 + jnp.sum(h2 * ws2, axis=-1, keepdims=True))          # (TB, 1)
    z_col = jax.nn.sigmoid(logit_col)

    # Gate z, lane-dense row form (1, TB) for the z output: produced directly
    # on the MXU with ws as LHS so the writeback is a contiguous unmasked
    # store (no (TB,1) sublane-strided vst.msk) and no in-kernel relayout.
    logit_row = (lax.dot_general(ws1, h1, dn, preferred_element_type=jnp.float32)
                 + lax.dot_general(ws2, h2, dn, preferred_element_type=jnp.float32))
    z_ref[...] = jax.nn.sigmoid(logit_row)                             # (1, TB)

    # Gated residual blend: y = x2 + z*(x1 - x2)   (3 VALU ops instead of 4).
    y_ref[...] = x2 + z_col * (x1 - x2)


def my_gru_layer(x1, x2, w1, ws, *, tb=2048):
    """x1, x2: (B, 128) f32; w1: (128, 128) torch (out,in); ws: (1, 256)."""
    B, D = x1.shape
    size_out, d_in = w1.shape
    assert D == 128 and d_in == 128 and size_out == 128
    assert x2.shape == (B, D)
    assert ws.shape == (1, 2 * size_out)

    # Pre-split the sigmoid head's weight row (removes the in-kernel concat).
    ws1 = ws[:, :size_out]
    ws2 = ws[:, size_out:]

    tb_eff = _choose_batch_tile(B, tb)
    grid = (pl.cdiv(B, tb_eff),)     # tail block (if any) is masked by Pallas

    y, z_row = pl.pallas_call(
        _gru_gate_kernel,
        out_shape=(
            jax.ShapeDtypeStruct((B, D), jnp.float32),
            jax.ShapeDtypeStruct((1, B), jnp.float32),   # lane-dense z
        ),
        grid_spec=pltpu.PrefetchScalarGridSpec(
            num_scalar_prefetch=0,
            grid=grid,
            in_specs=[
                pl.BlockSpec((tb_eff, D), lambda i: (i, 0)),        # x1 tile
                pl.BlockSpec((tb_eff, D), lambda i: (i, 0)),        # x2 tile
                pl.BlockSpec((size_out, D), lambda i: (0, 0)),      # W1 (resident)
                pl.BlockSpec((1, size_out), lambda i: (0, 0)),      # ws[:, :128]
                pl.BlockSpec((1, size_out), lambda i: (0, 0)),      # ws[:, 128:]
            ],
            out_specs=[
                pl.BlockSpec((tb_eff, D), lambda i: (i, 0)),        # y tile
                pl.BlockSpec((1, tb_eff), lambda i: (0, i)),        # z lane tile
            ],
        ),
        compiler_params=pltpu.CompilerParams(
            dimension_semantics=("parallel",)),
    )(x1, x2, w1, ws1, ws2)

    # (1, B) row-major -> (B, 1) row-major is a free relayout outside the kernel.
    return y, z_row.reshape(B, 1)


def _reference(x1, x2, w1, ws):
    h1 = jnp.tanh(x1 @ w1.T)
    h2 = jnp.tanh(x2 @ w1.T)
    h = jnp.concatenate([h1, h2], axis=1)
    z = jax.nn.sigmoid(h @ ws.T)
    return z * x1 + (1.0 - z) * x2, z


if __name__ == "__main__":
    key = jax.random.PRNGKey(0)
    k1, k2, kw1, kws = jax.random.split(key, 4)

    B, D, size_out = 512, 128, 128

    x1 = jax.random.normal(k1, (B, D), dtype=jnp.float32)
    x2 = jax.random.normal(k2, (B, D), dtype=jnp.float32)

    # Deterministic parameter init (PyTorch Linear weight layout: (out, in)),
    # uniform(-1/sqrt(in), 1/sqrt(in)) like nn.Linear's default.
    bound1 = 1.0 / jnp.sqrt(jnp.float32(D))
    w1 = jax.random.uniform(kw1, (size_out, D), jnp.float32, -bound1, bound1)
    bound_s = 1.0 / jnp.sqrt(jnp.float32(2 * size_out))
    ws = jax.random.uniform(kws, (1, 2 * size_out), jnp.float32, -bound_s, bound_s)

    y_ref, z_ref = _reference(x1, x2, w1, ws)

    # Default tiling path (B <= 512 -> single full-array block, grid=(1,)).
    y, z = my_gru_layer(x1, x2, w1, ws)
    jax.block_until_ready((y, z))
    assert y.shape == (B, D) and z.shape == (B, 1)
    assert jnp.allclose(y, y_ref, atol=1e-5, rtol=1e-5), "y mismatch"
    assert jnp.allclose(z, z_ref, atol=1e-5, rtol=1e-5), "z mismatch"

    # Multi-step, double-buffered grid (tb=128 -> grid=(4,)).
    y_t, z_t = my_gru_layer(x1, x2, w1, ws, tb=128)
    jax.block_until_ready((y_t, z_t))
    assert jnp.allclose(y_t, y_ref, atol=1e-5, rtol=1e-5), "y (tiled) mismatch"
    assert jnp.allclose(z_t, z_ref, atol=1e-5, rtol=1e-5), "z (tiled) mismatch"

    # Ragged batch: Pallas-masked tail block, no wrapper-side jnp.pad copy.
    Br = 300
    y_r, z_r = my_gru_layer(x1[:Br], x2[:Br], w1, ws, tb=128)
    jax.block_until_ready((y_r, z_r))
    assert jnp.allclose(y_r, y_ref[:Br], atol=1e-5, rtol=1e-5), "y (ragged) mismatch"
    assert jnp.allclose(z_r, z_ref[:Br], atol=1e-5, rtol=1e-5), "z (ragged) mismatch"

    # Tiny batch (like the torch test, B=4): single full-array block.
    y4, z4 = my_gru_layer(x1[:4], x2[:4], w1, ws)
    jax.block_until_ready((y4, z4))
    assert jnp.allclose(y4, y_ref[:4], atol=1e-5, rtol=1e-5), "y (small B) mismatch"
    assert jnp.allclose(z4, z_ref[:4], atol=1e-5, rtol=1e-5), "z (small B) mismatch"

    print("KERNEL_OK")
</pallas_src>

<mosaic_0001>
module attributes {stable_mosaic.version = 11 : i64} {
  func.func @_gru_gate_kernel(%arg0: i32, %arg1: memref<512x128xf32, #tpu.memory_space<vmem>>, %arg2: memref<512x128xf32, #tpu.memory_space<vmem>>, %arg3: memref<128x128xf32, #tpu.memory_space<vmem>>, %arg4: memref<1x128xf32, #tpu.memory_space<vmem>>, %arg5: memref<1x128xf32, #tpu.memory_space<vmem>>, %arg6: memref<512x128xf32, #tpu.memory_space<vmem>>, %arg7: memref<1x512xf32, #tpu.memory_space<vmem>>) attributes {dimension_semantics = [#tpu.dimension_semantics<parallel>], iteration_bounds = array<i64: 1>, scalar_prefetch = 0 : i64, scratch_operands = 0 : i64, tpu.core_type = #tpu.core_type<tc>, window_params = [{transform_indices = @transform_0, window_bounds = array<i64: 512, 128>}, {transform_indices = @transform_1, window_bounds = array<i64: 512, 128>}, {pipeline_mode = #tpu.pipeline_mode<synchronous>, transform_indices = @transform_2, window_bounds = array<i64: 128, 128>}, {pipeline_mode = #tpu.pipeline_mode<synchronous>, transform_indices = @transform_3, window_bounds = array<i64: 1, 128>}, {pipeline_mode = #tpu.pipeline_mode<synchronous>, transform_indices = @transform_4, window_bounds = array<i64: 1, 128>}, {transform_indices = @transform_5, window_bounds = array<i64: 512, 128>}, {transform_indices = @transform_6, window_bounds = array<i64: 1, 512>}]} {
    %c0 = arith.constant 0 : index
    %c0_0 = arith.constant 0 : index
    %0 = vector.load %arg1[%c0, %c0_0] : memref<512x128xf32, #tpu.memory_space<vmem>>, vector<512x128xf32>
    %c0_1 = arith.constant 0 : index
    %c0_2 = arith.constant 0 : index
    %1 = vector.load %arg2[%c0_1, %c0_2] : memref<512x128xf32, #tpu.memory_space<vmem>>, vector<512x128xf32>
    %c0_3 = arith.constant 0 : index
    %c0_4 = arith.constant 0 : index
    %2 = vector.load %arg3[%c0_3, %c0_4] : memref<128x128xf32, #tpu.memory_space<vmem>>, vector<128x128xf32>
    %c0_5 = arith.constant 0 : index
    %c0_6 = arith.constant 0 : index
    %3 = vector.load %arg4[%c0_5, %c0_6] : memref<1x128xf32, #tpu.memory_space<vmem>>, vector<1x128xf32>
    %c0_7 = arith.constant 0 : index
    %c0_8 = arith.constant 0 : index
    %4 = vector.load %arg5[%c0_7, %c0_8] : memref<1x128xf32, #tpu.memory_space<vmem>>, vector<1x128xf32>
    %cst = arith.constant dense<0.000000e+00> : vector<512x128xf32>
    %5 = tpu.matmul %0, %2, %cst {dimension_numbers = #tpu.dot_dimension_numbers<[1], [1], [0], [0], [0, 0, 1, 0], [], []>} : vector<512x128xf32>, vector<128x128xf32>, vector<512x128xf32> -> vector<512x128xf32>
    %6 = math.tanh %5 : vector<512x128xf32>
    %cst_9 = arith.constant dense<0.000000e+00> : vector<512x128xf32>
    %7 = tpu.matmul %1, %2, %cst_9 {dimension_numbers = #tpu.dot_dimension_numbers<[1], [1], [0], [0], [0, 0, 1, 0], [], []>} : vector<512x128xf32>, vector<128x128xf32>, vector<512x128xf32> -> vector<512x128xf32>
    %8 = math.tanh %7 : vector<512x128xf32>
    %9 = vector.broadcast %3 : vector<1x128xf32> to vector<512x128xf32>
    %10 = arith.mulf %6, %9 : vector<512x128xf32>
    %cst_10 = arith.constant dense<0.000000e+00> : vector<512xf32>
    %11 = vector.multi_reduction <add>, %10, %cst_10 [1] : vector<512x128xf32> to vector<512xf32>
    %12 = vector.shape_cast %11 : vector<512xf32> to vector<512x1xf32>
    %13 = vector.broadcast %4 : vector<1x128xf32> to vector<512x128xf32>
    %14 = arith.mulf %8, %13 : vector<512x128xf32>
    %cst_11 = arith.constant dense<0.000000e+00> : vector<512xf32>
    %15 = vector.multi_reduction <add>, %14, %cst_11 [1] : vector<512x128xf32> to vector<512xf32>
    %16 = vector.shape_cast %15 : vector<512xf32> to vector<512x1xf32>
    %17 = arith.addf %12, %16 : vector<512x1xf32>
    %18 = arith.negf %17 : vector<512x1xf32>
    %19 = math.exp %18 : vector<512x1xf32>
    %cst_12 = arith.constant 1.000000e+00 : f32
    %20 = vector.broadcast %cst_12 : f32 to vector<512x1xf32>
    %21 = arith.addf %20, %19 : vector<512x1xf32>
    %22 = arith.divf %20, %21 : vector<512x1xf32>
    %cst_13 = arith.constant dense<0.000000e+00> : vector<1x512xf32>
    %23 = tpu.matmul %3, %6, %cst_13 {dimension_numbers = #tpu.dot_dimension_numbers<[1], [1], [0], [0], [0, 0, 1, 0], [], []>} : vector<1x128xf32>, vector<512x128xf32>, vector<1x512xf32> -> vector<1x512xf32>
    %cst_14 = arith.constant dense<0.000000e+00> : vector<1x512xf32>
    %24 = tpu.matmul %4, %8, %cst_14 {dimension_numbers = #tpu.dot_dimension_numbers<[1], [1], [0], [0], [0, 0, 1, 0], [], []>} : vector<1x128xf32>, vector<512x128xf32>, vector<1x512xf32> -> vector<1x512xf32>
    %25 = arith.addf %23, %24 : vector<1x512xf32>
    %26 = arith.negf %25 : vector<1x512xf32>
    %27 = math.exp %26 : vector<1x512xf32>
    %cst_15 = arith.constant 1.000000e+00 : f32
    %28 = vector.broadcast %cst_15 : f32 to vector<1x512xf32>
    %29 = arith.addf %28, %27 : vector<1x512xf32>
    %30 = arith.divf %28, %29 : vector<1x512xf32>
    %c0_16 = arith.constant 0 : index
    %c0_17 = arith.constant 0 : index
    %31 = vector.load %arg7[%c0_16, %c0_17] : memref<1x512xf32, #tpu.memory_space<vmem>>, vector<1x512xf32>
    tpu.vector_store %arg7[%c0_16, %c0_17], %30 {strides = array<i32>} : memref<1x512xf32, #tpu.memory_space<vmem>>, vector<1x512xf32>,
    %32 = arith.subf %0, %1 : vector<512x128xf32>
    %33 = vector.broadcast %22 : vector<512x1xf32> to vector<512x128xf32>
    %34 = arith.mulf %33, %32 : vector<512x128xf32>
    %35 = arith.addf %1, %34 : vector<512x128xf32>
    %c0_18 = arith.constant 0 : index
    %c0_19 = arith.constant 0 : index
    %36 = vector.load %arg6[%c0_18, %c0_19] : memref<512x128xf32, #tpu.memory_space<vmem>>, vector<512x128xf32>
    tpu.vector_store %arg6[%c0_18, %c0_19], %35 {strides = array<i32>} : memref<512x128xf32, #tpu.memory_space<vmem>>, vector<512x128xf32>,
    return
  }
  func.func @transform_0(%arg0: i32) -> (i32, i32) {
    %c0_i32 = arith.constant 0 : i32
    %c0_i32_0 = arith.constant 0 : i32
    return %arg0, %c0_i32 : i32, i32
  }
  func.func @transform_1(%arg0: i32) -> (i32, i32) {
    %c0_i32 = arith.constant 0 : i32
    %c0_i32_0 = arith.constant 0 : i32
    return %arg0, %c0_i32 : i32, i32
  }
  func.func @transform_2(%arg0: i32) -> (i32, i32) {
    %c0_i32 = arith.constant 0 : i32
    %c0_i32_0 = arith.constant 0 : i32
    %c0_i32_1 = arith.constant 0 : i32
    return %c0_i32, %c0_i32_0 : i32, i32
  }
  func.func @transform_3(%arg0: i32) -> (i32, i32) {
    %c0_i32 = arith.constant 0 : i32
    %c0_i32_0 = arith.constant 0 : i32
    %c0_i32_1 = arith.constant 0 : i32
    return %c0_i32, %c0_i32_0 : i32, i32
  }
  func.func @transform_4(%arg0: i32) -> (i32, i32) {
    %c0_i32 = arith.constant 0 : i32
    %c0_i32_0 = arith.constant 0 : i32
    %c0_i32_1 = arith.constant 0 : i32
    return %c0_i32, %c0_i32_0 : i32, i32
  }
  func.func @transform_5(%arg0: i32) -> (i32, i32) {
    %c0_i32 = arith.constant 0 : i32
    %c0_i32_0 = arith.constant 0 : i32
    return %arg0, %c0_i32 : i32, i32
  }
  func.func @transform_6(%arg0: i32) -> (i32, i32) {
    %c0_i32 = arith.constant 0 : i32
    %c0_i32_0 = arith.constant 0 : i32
    return %c0_i32, %arg0 : i32, i32
  }
}

</mosaic_0001>

<llo_original>
// kernel: tpu_custom_call.1
$region0: #{tpu_custom_call.1}
  #allocation0 [shape = 'u32[]', space=smem, size = 0x4, offset = 0x4, fixed_abs, tag = 'smem constant byte address 0x4 - core index']
  #allocation1 [shape = 'u32[144,128]{1,0:T(1,128)}', space=vmem, size = 0x12000, scoped, tag = 'internal scratch']
  %s0 = inlined_call_operand.hbm [shape: f32[512,128], index: 0, kind: input, shape index: {}]
  %s1 = inlined_call_operand.hbm [shape: f32[512,128], index: 1, kind: input, shape index: {}]
  %s2 = inlined_call_operand.hbm [shape: f32[128,128], index: 2, kind: input, shape index: {}]
  %s3 = inlined_call_operand.vmem [shape: f32[1,128], index: 3, kind: input, shape index: {}]
  %s4 = inlined_call_operand.vmem [shape: f32[1,128], index: 4, kind: input, shape index: {}]
  %s5 = inlined_call_operand.hbm [shape: f32[512,128], index: 5, kind: output, shape index: {0}]
  %s6 = inlined_call_operand.hbm [shape: f32[1,512], index: 6, kind: output, shape index: {1}]
  %7 = xla_tuple %s5, %s6
  %s8 = sld [smem:[#allocation0]]
  $region50: #{tpu_custom_call.1} parent=0
    _
  %s10 = ssub.s32 1, %s8
  %s11 = scalar_select 0, %s10, %s8
  $region1: #{tpu_custom_call.1} parent=0
    #allocation2 [shape = 'u8[262144]{0}', space=vmem, size = 0x40000, scoped, tag = 'input window, operand 0, single buffered']
    #allocation3 [shape = 's32[1]{0}', space=sflag, size = 0x4, scoped, tag = 'scoped memory for tpu_custom_call.1']
    #allocation4 [shape = 's32[1]{0}', space=sflag, size = 0x4, scoped, tag = 'scoped memory for tpu_custom_call.1']
    #allocation5 [shape = 'u8[262144]{0}', space=vmem, size = 0x40000, scoped, tag = 'input window, operand 1, single buffered']
    #allocation6 [shape = 's32[1]{0}', space=sflag, size = 0x4, scoped, tag = 'scoped memory for tpu_custom_call.1']
    #allocation7 [shape = 'u8[65536]{0}', space=vmem, size = 0x10000, scoped, tag = 'input window, operand 2, single buffered']
    #allocation8 [shape = 'u8[262144]{0}', space=vmem, size = 0x40000, scoped, tag = 'output window, operand 0, single buffered']
    #allocation9 [shape = 'u8[2048]{0}', space=vmem, size = 0x800, scoped, tag = 'output window, operand 1, single buffered']
    #allocation10 [shape = 's32[1]{0}', space=sflag, size = 0x4, scoped, tag = 'scoped memory for tpu_custom_call.1']
    %12 = vsyncpa [#allocation3], 0
    %13 = vsyncpa [#allocation6], 0
    %14 = vsyncpa [#allocation4], 0
    %15 = vsyncpa [#allocation10], 0
    // Predicated region
    $region2: #{tpu_custom_call.1} parent=1 // pred_check
      _
    $region3: #{tpu_custom_call.1} parent=1 // pred_check_branch
      %17 = sbr.rel (0) target = $region5
    $region4: #{tpu_custom_call.1} parent=1 // pred_region
      %s19 = ssub.s32 8192, 8192
      %20 = vsyncadd [#allocation3], %s19
      %s21 = sshll.u32 [#allocation2], 4
      %s22 = int_to_ptr.vmem [resolvable:$true] %s21
      %27 = dma.hbm_to_vmem [thread:$0]  %s0, 8192, %s22, [#allocation3], 128, 128, 8
    $region5: #{tpu_custom_call.1} parent=1 // pred_fallthru
      _
    // Predicated region
    $region6: #{tpu_custom_call.1} parent=1 // pred_check
      _
    $region7: #{tpu_custom_call.1} parent=1 // pred_check_branch
      %29 = sbr.rel (0) target = $region9
    $region8: #{tpu_custom_call.1} parent=1 // pred_region
      %s31 = ssub.s32 8192, 8192
      %32 = vsyncadd [#allocation6], %s31
      %s33 = sshll.u32 [#allocation5], 4
      %s34 = int_to_ptr.vmem [resolvable:$true] %s33
      %39 = dma.hbm_to_vmem [thread:$0]  %s1, 8192, %s34, [#allocation6], 128, 128, 8
    $region9: #{tpu_custom_call.1} parent=1 // pred_fallthru
      _
    // Predicated region
    $region10: #{tpu_custom_call.1} parent=1 // pred_check
      _
    $region11: #{tpu_custom_call.1} parent=1 // pred_check_branch
      %41 = sbr.rel (0) target = $region13
    $region12: #{tpu_custom_call.1} parent=1 // pred_region
      %s43 = ssub.s32 2048, 2048
      %44 = vsyncadd [#allocation6], %s43
      %s45 = sshll.u32 [#allocation7], 4
      %s46 = int_to_ptr.vmem [resolvable:$true] %s45
      %51 = dma.hbm_to_vmem [thread:$0]  %s2, 2048, %s46, [#allocation6], 128, 128, 8
    $region13: #{tpu_custom_call.1} parent=1 // pred_fallthru
      _
    // Predicated region
    $region14: #{tpu_custom_call.1} parent=1 // pred_check
      _
    $region15: #{tpu_custom_call.1} parent=1 // pred_check_branch
      %53 = sbr.rel (0) target = $region17
    $region16: #{tpu_custom_call.1} parent=1 // pred_region
      _
    $region17: #{tpu_custom_call.1} parent=1 // pred_fallthru
      _
    // Predicated region
    $region18: #{tpu_custom_call.1} parent=1 // pred_check
      _
    $region19: #{tpu_custom_call.1} parent=1 // pred_check_branch
      %55 = sbr.rel (0) target = $region21
    $region20: #{tpu_custom_call.1} parent=1 // pred_region
      _
    $region21: #{tpu_custom_call.1} parent=1 // pred_fallthru
      _
    // Predicated region
    $region22: #{tpu_custom_call.1} parent=1 // pred_check
      _
    $region23: #{tpu_custom_call.1} parent=1 // pred_check_branch
      %57 = sbr.rel (0) target = $region25
    $region24: #{tpu_custom_call.1} parent=1 // pred_region
      %58 = dma.done [#allocation3], 8192
    $region25: #{tpu_custom_call.1} parent=1 // pred_fallthru
      _
    // Predicated region
    $region26: #{tpu_custom_call.1} parent=1 // pred_check
      _
    $region27: #{tpu_custom_call.1} parent=1 // pred_check_branch
      %60 = sbr.rel (0) target = $region29
    $region28: #{tpu_custom_call.1} parent=1 // pred_region
      %61 = dma.done [#allocation6], 8192
    $region29: #{tpu_custom_call.1} parent=1 // pred_fallthru
      _
    // Predicated region
    $region30: #{tpu_custom_call.1} parent=1 // pred_check
      _
    $region31: #{tpu_custom_call.1} parent=1 // pred_check_branch
      %63 = sbr.rel (0) target = $region33
    $region32: #{tpu_custom_call.1} parent=1 // pred_region
      %64 = dma.done [#allocation6], 2048
    $region33: #{tpu_custom_call.1} parent=1 // pred_fallthru
      _
    %v65 = vld [vmem:[#allocation2] sm:$0xff]
    %v66 = vld [vmem:[#allocation2 + $0x8] sm:$0xff]
    %v67 = vld [vmem:[#allocation2 + $0x10] sm:$0xff]
    %v68 = vld [vmem:[#allocation2 + $0x18] sm:$0xff]
    %v69 = vld [vmem:[#allocation2 + $0x20] sm:$0xff]
    %v70 = vld [vmem:[#allocation2 + $0x28] sm:$0xff]
    %v71 = vld [vmem:[#allocation2 + $0x30] sm:$0xff]
    %v72 = vld [vmem:[#allocation2 + $0x38] sm:$0xff]
    %v73 = vld [vmem:[#allocation2 + $0x40] sm:$0xff]
    %v74 = vld [vmem:[#allocation2 + $0x48] sm:$0xff]
    %v75 = vld [vmem:[#allocation2 + $0x50] sm:$0xff]
    %v76 = vld [vmem:[#allocation2 + $0x58] sm:$0xff]
    %v77 = vld [vmem:[#allocation2 + $0x60] sm:$0xff]
    %v78 = vld [vmem:[#allocation2 + $0x68] sm:$0xff]
    %v79 = vld [vmem:[#allocation2 + $0x70] sm:$0xff]
    %v80 = vld [vmem:[#allocation2 + $0x78] sm:$0xff]
    %v81 = vld [vmem:[#allocation2 + $0x80] sm:$0xff]
    %v82 = vld [vmem:[#allocation2 + $0x88] sm:$0xff]
    %v83 = vld [vmem:[#allocation2 + $0x90] sm:$0xff]
    %v84 = vld [vmem:[#allocation2 + $0x98] sm:$0xff]
    %v85 = vld [vmem:[#allocation2 + $0xa0] sm:$0xff]
    %v86 = vld [vmem:[#allocation2 + $0xa8] sm:$0xff]
    %v87 = vld [vmem:[#allocation2 + $0xb0] sm:$0xff]
    %v88 = vld [vmem:[#allocation2 + $0xb8] sm:$0xff]
    %v89 = vld [vmem:[#allocation2 + $0xc0] sm:$0xff]
    %v90 = vld [vmem:[#allocation2 + $0xc8] sm:$0xff]
    %v91 = vld [vmem:[#allocation2 + $0xd0] sm:$0xff]
    %v92 = vld [vmem:[#allocation2 + $0xd8] sm:$0xff]
    %v93 = vld [vmem:[#allocation2 + $0xe0] sm:$0xff]
    %v94 = vld [vmem:[#allocation2 + $0xe8] sm:$0xff]
    %v95 = vld [vmem:[#allocation2 + $0xf0] sm:$0xff]
    %v96 = vld [vmem:[#allocation2 + $0xf8] sm:$0xff]
    %v97 = vld [vmem:[#allocation2 + $0x100] sm:$0xff]
    %v98 = vld [vmem:[#allocation2 + $0x108] sm:$0xff]
    %v99 = vld [vmem:[#allocation2 + $0x110] sm:$0xff]
    %v100 = vld [vmem:[#allocation2 + $0x118] sm:$0xff]
    %v101 = vld [vmem:[#allocation2 + $0x120] sm:$0xff]
    %v102 = vld [vmem:[#allocation2 + $0x128] sm:$0xff]
    %v103 = vld [vmem:[#allocation2 + $0x130] sm:$0xff]
    %v104 = vld [vmem:[#allocation2 + $0x138] sm:$0xff]
    %v105 = vld [vmem:[#allocation2 + $0x140] sm:$0xff]
    %v106 = vld [vmem:[#allocation2 + $0x148] sm:$0xff]
    %v107 = vld [vmem:[#allocation2 + $0x150] sm:$0xff]
    %v108 = vld [vmem:[#allocation2 + $0x158] sm:$0xff]
    %v109 = vld [vmem:[#allocation2 + $0x160] sm:$0xff]
    %v110 = vld [vmem:[#allocation2 + $0x168] sm:$0xff]
    %v111 = vld [vmem:[#allocation2 + $0x170] sm:$0xff]
    %v112 = vld [vmem:[#allocation2 + $0x178] sm:$0xff]
    %v113 = vld [vmem:[#allocation2 + $0x180] sm:$0xff]
    %v114 = vld [vmem:[#allocation2 + $0x188] sm:$0xff]
    %v115 = vld [vmem:[#allocation2 + $0x190] sm:$0xff]
    %v116 = vld [vmem:[#allocation2 + $0x198] sm:$0xff]
    %v117 = vld [vmem:[#allocation2 + $0x1a0] sm:$0xff]
    %v118 = vld [vmem:[#allocation2 + $0x1a8] sm:$0xff]
    %v119 = vld [vmem:[#allocation2 + $0x1b0] sm:$0xff]
    %v120 = vld [vmem:[#allocation2 + $0x1b8] sm:$0xff]
    %v121 = vld [vmem:[#allocation2 + $0x1c0] sm:$0xff]
    %v122 = vld [vmem:[#allocation2 + $0x1c8] sm:$0xff]
    %v123 = vld [vmem:[#allocation2 + $0x1d0] sm:$0xff]
    %v124 = vld [vmem:[#allocation2 + $0x1d8] sm:$0xff]
    %v125 = vld [vmem:[#allocation2 + $0x1e0] sm:$0xff]
    %v126 = vld [vmem:[#allocation2 + $0x1e8] sm:$0xff]
    %v127 = vld [vmem:[#allocation2 + $0x1f0] sm:$0xff]
    %v128 = vld [vmem:[#allocation2 + $0x1f8] sm:$0xff]
    %v129 = vld [vmem:[#allocation5] sm:$0xff]
    %v130 = vld [vmem:[#allocation5 + $0x8] sm:$0xff]
    %v131 = vld [vmem:[#allocation5 + $0x10] sm:$0xff]
    %v132 = vld [vmem:[#allocation5 + $0x18] sm:$0xff]
    %v133 = vld [vmem:[#allocation5 + $0x20] sm:$0xff]
    %v134 = vld [vmem:[#allocation5 + $0x28] sm:$0xff]
    %v135 = vld [vmem:[#allocation5 + $0x30] sm:$0xff]
    %v136 = vld [vmem:[#allocation5 + $0x38] sm:$0xff]
    %v137 = vld [vmem:[#allocation5 + $0x40] sm:$0xff]
    %v138 = vld [vmem:[#allocation5 + $0x48] sm:$0xff]
    %v139 = vld [vmem:[#allocation5 + $0x50] sm:$0xff]
    %v140 = vld [vmem:[#allocation5 + $0x58] sm:$0xff]
    %v141 = vld [vmem:[#allocation5 + $0x60] sm:$0xff]
    %v142 = vld [vmem:[#allocation5 + $0x68] sm:$0xff]
    %v143 = vld [vmem:[#allocation5 + $0x70] sm:$0xff]
    %v144 = vld [vmem:[#allocation5 + $0x78] sm:$0xff]
    %v145 = vld [vmem:[#allocation5 + $0x80] sm:$0xff]
    %v146 = vld [vmem:[#allocation5 + $0x88] sm:$0xff]
    %v147 = vld [vmem:[#allocation5 + $0x90] sm:$0xff]
    %v148 = vld [vmem:[#allocation5 + $0x98] sm:$0xff]
    %v149 = vld [vmem:[#allocation5 + $0xa0] sm:$0xff]
    %v150 = vld [vmem:[#allocation5 + $0xa8] sm:$0xff]
    %v151 = vld [vmem:[#allocation5 + $0xb0] sm:$0xff]
    %v152 = vld [vmem:[#allocation5 + $0xb8] sm:$0xff]
    %v153 = vld [vmem:[#allocation5 + $0xc0] sm:$0xff]
    %v154 = vld [vmem:[#allocation5 + $0xc8] sm:$0xff]
    %v155 = vld [vmem:[#allocation5 + $0xd0] sm:$0xff]
    %v156 = vld [vmem:[#allocation5 + $0xd8] sm:$0xff]
    %v157 = vld [vmem:[#allocation5 + $0xe0] sm:$0xff]
    %v158 = vld [vmem:[#allocation5 + $0xe8] sm:$0xff]
    %v159 = vld [vmem:[#allocation5 + $0xf0] sm:$0xff]
    %v160 = vld [vmem:[#allocation5 + $0xf8] sm:$0xff]
    %v161 = vld [vmem:[#allocation5 + $0x100] sm:$0xff]
    %v162 = vld [vmem:[#allocation5 + $0x108] sm:$0xff]
    %v163 = vld [vmem:[#allocation5 + $0x110] sm:$0xff]
    %v164 = vld [vmem:[#allocation5 + $0x118] sm:$0xff]
    %v165 = vld [vmem:[#allocation5 + $0x120] sm:$0xff]
    %v166 = vld [vmem:[#allocation5 + $0x128] sm:$0xff]
    %v167 = vld [vmem:[#allocation5 + $0x130] sm:$0xff]
    %v168 = vld [vmem:[#allocation5 + $0x138] sm:$0xff]
    %v169 = vld [vmem:[#allocation5 + $0x140] sm:$0xff]
    %v170 = vld [vmem:[#allocation5 + $0x148] sm:$0xff]
    %v171 = vld [vmem:[#allocation5 + $0x150] sm:$0xff]
    %v172 = vld [vmem:[#allocation5 + $0x158] sm:$0xff]
    %v173 = vld [vmem:[#allocation5 + $0x160] sm:$0xff]
    %v174 = vld [vmem:[#allocation5 + $0x168] sm:$0xff]
    %v175 = vld [vmem:[#allocation5 + $0x170] sm:$0xff]
    %v176 = vld [vmem:[#allocation5 + $0x178] sm:$0xff]
    %v177 = vld [vmem:[#allocation5 + $0x180] sm:$0xff]
    %v178 = vld [vmem:[#allocation5 + $0x188] sm:$0xff]
    %v179 = vld [vmem:[#allocation5 + $0x190] sm:$0xff]
    %v180 = vld [vmem:[#allocation5 + $0x198] sm:$0xff]
    %v181 = vld [vmem:[#allocation5 + $0x1a0] sm:$0xff]
    %v182 = vld [vmem:[#allocation5 + $0x1a8] sm:$0xff]
    %v183 = vld [vmem:[#allocation5 + $0x1b0] sm:$0xff]
    %v184 = vld [vmem:[#allocation5 + $0x1b8] sm:$0xff]
    %v185 = vld [vmem:[#allocation5 + $0x1c0] sm:$0xff]
    %v186 = vld [vmem:[#allocation5 + $0x1c8] sm:$0xff]
    %v187 = vld [vmem:[#allocation5 + $0x1d0] sm:$0xff]
    %v188 = vld [vmem:[#allocation5 + $0x1d8] sm:$0xff]
    %v189 = vld [vmem:[#allocation5 + $0x1e0] sm:$0xff]
    %v190 = vld [vmem:[#allocation5 + $0x1e8] sm:$0xff]
    %v191 = vld [vmem:[#allocation5 + $0x1f0] sm:$0xff]
    %v192 = vld [vmem:[#allocation5 + $0x1f8] sm:$0xff]
    %v193 = vld [vmem:[#allocation7] sm:$0xff]
    %v194 = vld [vmem:[#allocation7 + $0x8] sm:$0xff]
    %v195 = vld [vmem:[#allocation7 + $0x10] sm:$0xff]
    %v196 = vld [vmem:[#allocation7 + $0x18] sm:$0xff]
    %v197 = vld [vmem:[#allocation7 + $0x20] sm:$0xff]
    %v198 = vld [vmem:[#allocation7 + $0x28] sm:$0xff]
    %v199 = vld [vmem:[#allocation7 + $0x30] sm:$0xff]
    %v200 = vld [vmem:[#allocation7 + $0x38] sm:$0xff]
    %v201 = vld [vmem:[#allocation7 + $0x40] sm:$0xff]
    %v202 = vld [vmem:[#allocation7 + $0x48] sm:$0xff]
    %v203 = vld [vmem:[#allocation7 + $0x50] sm:$0xff]
    %v204 = vld [vmem:[#allocation7 + $0x58] sm:$0xff]
    %v205 = vld [vmem:[#allocation7 + $0x60] sm:$0xff]
    %v206 = vld [vmem:[#allocation7 + $0x68] sm:$0xff]
    %v207 = vld [vmem:[#allocation7 + $0x70] sm:$0xff]
    %v208 = vld [vmem:[#allocation7 + $0x78] sm:$0xff]
    %v209 = vld [vmem:[%s3] sm:$0x1]
    %v210 = vld [vmem:[%s4] sm:$0x1]
    %211 = vmatprep.subr.mxu0 0.0
    %212 = vmatpush1.xpose.msra.mxu0 %v193
    %213 = vmatprep.subr.mxu0 0.0
    %214 = vmatpush1.xpose.msra.mxu0 %v194
    %215 = vmatprep.subr.mxu0 0.0
    %216 = vmatpush1.xpose.msra.mxu0 %v195
    %217 = vmatprep.subr.mxu0 0.0
    %218 = vmatpush1.xpose.msra.mxu0 %v196
    %219 = vmatprep.subr.mxu0 0.0
    %220 = vmatpush1.xpose.msra.mxu0 %v197
    %221 = vmatprep.subr.mxu0 0.0
    %222 = vmatpush1.xpose.msra.mxu0 %v198
    %223 = vmatprep.subr.mxu0 0.0
    %224 = vmatpush1.xpose.msra.mxu0 %v199
    %225 = vmatprep.subr.mxu0 0.0
    %226 = vmatpush1.xpose.msra.mxu0 %v200
    %227 = vmatprep.subr.mxu0 0.0
    %228 = vmatpush1.xpose.msra.mxu0 %v201
    %229 = vmatprep.subr.mxu0 0.0
    %230 = vmatpush1.xpose.msra.mxu0 %v202
    %231 = vmatprep.subr.mxu0 0.0
    %232 = vmatpush1.xpose.msra.mxu0 %v203
    %233 = vmatprep.subr.mxu0 0.0
    %234 = vmatpush1.xpose.msra.mxu0 %v204
    %235 = vmatprep.subr.mxu0 0.0
    %236 = vmatpush1.xpose.msra.mxu0 %v205
    %237 = vmatprep.subr.mxu0 0.0
    %238 = vmatpush1.xpose.msra.mxu0 %v206
    %239 = vmatprep.subr.mxu0 0.0
    %240 = vmatpush1.xpose.msra.mxu0 %v207
    %241 = vmatprep.subr.mxu0 0.0
    %242 = vmatpush1.xpose.msra.mxu0 %v208
    %243 = vmatprep.subr.mxu0 0.0
    %244 = vmatpush1.xpose.msra.mxu0 0.0
    %245 = vmatprep.subr.mxu0 0.0
    %246 = vmatpush1.xpose.msra.mxu0 0.0
    %247 = vmatprep.subr.mxu0 0.0
    %248 = vmatpush1.xpose.msra.mxu0 0.0
    %249 = vmatprep.subr.mxu0 0.0
    %250 = vmatpush1.xpose.msra.mxu0 0.0
    %251 = vmatprep.subr.mxu0 0.0
    %252 = vmatpush1.xpose.msra.mxu0 0.0
    %253 = vmatprep.subr.mxu0 0.0
    %254 = vmatpush1.xpose.msra.mxu0 0.0
    %255 = vmatprep.subr.mxu0 0.0
    %256 = vmatpush1.xpose.msra.mxu0 0.0
    %257 = vmatprep.subr.mxu0 0.0
    %258 = vmatpush1.xpose.msra.mxu0 0.0
    %259 = vmatprep.subr.mxu0 0.0
    %260 = vmatpush1.xpose.msra.mxu0 0.0
    %261 = vmatprep.subr.mxu0 0.0
    %262 = vmatpush1.xpose.msra.mxu0 0.0
    %263 = vmatprep.subr.mxu0 0.0
    %264 = vmatpush1.xpose.msra.mxu0 0.0
    %265 = vmatprep.subr.mxu0 0.0
    %266 = vmatpush1.xpose.msra.mxu0 0.0
    %267 = vmatprep.subr.mxu0 0.0
    %268 = vmatpush1.xpose.msra.mxu0 0.0
    %269 = vmatprep.subr.mxu0 0.0
    %270 = vmatpush1.xpose.msra.mxu0 0.0
    %271 = vmatprep.subr.mxu0 0.0
    %272 = vmatpush1.xpose.msra.mxu0 0.0
    %273 = vmatprep.subr.mxu0 0.0
    %274 = vmatpush1.xpose.msra.mxu0 0.0
    %275 = vmatprep.mubr.f32.mxu0 0.0
    %276 = vmatmul.mubr.f32.gmra.mrb[0].mxu0 %v65
    %v277 = vpop.f32.mrb[0].mxu0
    %v278 = vadd.f32 0.0, %v277
    %v279 = vpop.f32.mrb[0].mxu0
    %280 = vmatprep.mubr.f32.mxu0 0.0
    %281 = vmatmul.mubr.f32.gmra.mrb[0].mxu0 %v66
    %v282 = vpop.f32.mrb[0].mxu0
    %v283 = vadd.f32 0.0, %v282
    %v284 = vpop.f32.mrb[0].mxu0
    %285 = vmatprep.mubr.f32.mxu0 0.0
    %286 = vmatmul.mubr.f32.gmra.mrb[0].mxu0 %v67
    %v287 = vpop.f32.mrb[0].mxu0
    %v288 = vadd.f32 0.0, %v287
    %v289 = vpop.f32.mrb[0].mxu0
    %290 = vmatprep.mubr.f32.mxu0 0.0
    %291 = vmatmul.mubr.f32.gmra.mrb[0].mxu0 %v68
    %v292 = vpop.f32.mrb[0].mxu0
    %v293 = vadd.f32 0.0, %v292
    %v294 = vpop.f32.mrb[0].mxu0
    %295 = vmatprep.mubr.f32.mxu0 0.0
    %296 = vmatmul.mubr.f32.gmra.mrb[0].mxu0 %v69
    %v297 = vpop.f32.mrb[0].mxu0
    %v298 = vadd.f32 0.0, %v297
    %v299 = vpop.f32.mrb[0].mxu0
    %300 = vmatprep.mubr.f32.mxu0 0.0
    %301 = vmatmul.mubr.f32.gmra.mrb[0].mxu0 %v70
    %v302 = vpop.f32.mrb[0].mxu0
    %v303 = vadd.f32 0.0, %v302
    %v304 = vpop.f32.mrb[0].mxu0
    %305 = vmatprep.mubr.f32.mxu0 0.0
    %306 = vmatmul.mubr.f32.gmra.mrb[0].mxu0 %v71
    %v307 = vpop.f32.mrb[0].mxu0
    %v308 = vadd.f32 0.0, %v307
    %v309 = vpop.f32.mrb[0].mxu0
    %310 = vmatprep.mubr.f32.mxu0 0.0
    %311 = vmatmul.mubr.f32.gmra.mrb[0].mxu0 %v72
    %v312 = vpop.f32.mrb[0].mxu0
    %v313 = vadd.f32 0.0, %v312
    %v314 = vpop.f32.mrb[0].mxu0
    %315 = vmatprep.mubr.f32.mxu0 0.0
    %316 = vmatmul.mubr.f32.gmra.mrb[0].mxu0 %v73
    %v317 = vpop.f32.mrb[0].mxu0
    %v318 = vadd.f32 0.0, %v317
    %v319 = vpop.f32.mrb[0].mxu0
    %320 = vmatprep.mubr.f32.mxu0 0.0
    %321 = vmatmul.mubr.f32.gmra.mrb[0].mxu0 %v74
    %v322 = vpop.f32.mrb[0].mxu0
    %v323 = vadd.f32 0.0, %v322
    %v324 = vpop.f32.mrb[0].mxu0
    %325 = vmatprep.mubr.f32.mxu0 0.0
    %326 = vmatmul.mubr.f32.gmra.mrb[0].mxu0 %v75
    %v327 = vpop.f32.mrb[0].mxu0
    %v328 = vadd.f32 0.0, %v327
    %v329 = vpop.f32.mrb[0].mxu0
    %330 = vmatprep.mubr.f32.mxu0 0.0
    %331 = vmatmul.mubr.f32.gmra.mrb[0].mxu0 %v76
    %v332 = vpop.f32.mrb[0].mxu0
    %v333 = vadd.f32 0.0, %v332
    %v334 = vpop.f32.mrb[0].mxu0
    %335 = vmatprep.mubr.f32.mxu0 0.0
    %336 = vmatmul.mubr.f32.gmra.mrb[0].mxu0 %v77
    %v337 = vpop.f32.mrb[0].mxu0
    %v338 = vadd.f32 0.0, %v337
    %v339 = vpop.f32.mrb[0].mxu0
    %340 = vmatprep.mubr.f32.mxu0 0.0
    %341 = vmatmul.mubr.f32.gmra.mrb[0].mxu0 %v78
    %v342 = vpop.f32.mrb[0].mxu0
    %v343 = vadd.f32 0.0, %v342
    %v344 = vpop.f32.mrb[0].mxu0
    %345 = vmatprep.mubr.f32.mxu0 0.0
    %346 = vmatmul.mubr.f32.gmra.mrb[0].mxu0 %v79
    %v347 = vpop.f32.mrb[0].mxu0
    %v348 = vadd.f32 0.0, %v347
    %v349 = vpop.f32.mrb[0].mxu0
    %350 = vmatprep.mubr.f32.mxu0 0.0
    %351 = vmatmul.mubr.f32.gmra.mrb[0].mxu0 %v80
    %v352 = vpop.f32.mrb[0].mxu0
    %v353 = vadd.f32 0.0, %v352
    %v354 = vpop.f32.mrb[0].mxu0
    %355 = vmatprep.mubr.f32.mxu0 0.0
    %356 = vmatmul.mubr.f32.gmra.mrb[0].mxu0 %v81
    %v357 = vpop.f32.mrb[0].mxu0
    %v358 = vadd.f32 0.0, %v357
    %v359 = vpop.f32.mrb[0].mxu0
    %360 = vmatprep.mubr.f32.mxu0 0.0
    %361 = vmatmul.mubr.f32.gmra.mrb[0].mxu0 %v82
    %v362 = vpop.f32.mrb[0].mxu0
    %v363 = vadd.f32 0.0, %v362
    %v364 = vpop.f32.mrb[0].mxu0
    %365 = vmatprep.mubr.f32.mxu0 0.0
    %366 = vmatmul.mubr.f32.gmra.mrb[0].mxu0 %v83
    %v367 = vpop.f32.mrb[0].mxu0
    %v368 = vadd.f32 0.0, %v367
    %v369 = vpop.f32.mrb[0].mxu0
    %370 = vmatprep.mubr.f32.mxu0 0.0
    %371 = vmatmul.mubr.f32.gmra.mrb[0].mxu0 %v84
    %v372 = vpop.f32.mrb[0].mxu0
    %v373 = vadd.f32 0.0, %v372
    %v374 = vpop.f32.mrb[0].mxu0
    %375 = vmatprep.mubr.f32.mxu0 0.0
    %376 = vmatmul.mubr.f32.gmra.mrb[0].mxu0 %v85
    %v377 = vpop.f32.mrb[0].mxu0
    %v378 = vadd.f32 0.0, %v377
    %v379 = vpop.f32.mrb[0].mxu0
    %380 = vmatprep.mubr.f32.mxu0 0.0
    %381 = vmatmul.mubr.f32.gmra.mrb[0].mxu0 %v86
    %v382 = vpop.f32.mrb[0].mxu0
    %v383 = vadd.f32 0.0, %v382
    %v384 = vpop.f32.mrb[0].mxu0
    %385 = vmatprep.mubr.f32.mxu0 0.0
    %386 = vmatmul.mubr.f32.gmra.mrb[0].mxu0 %v87
    %v387 = vpop.f32.mrb[0].mxu0
    %v388 = vadd.f32 0.0, %v387
    %v389 = vpop.f32.mrb[0].mxu0
    %390 = vmatprep.mubr.f32.mxu0 0.0
    %391 = vmatmul.mubr.f32.gmra.mrb[0].mxu0 %v88
    %v392 = vpop.f32.mrb[0].mxu0
    %v393 = vadd.f32 0.0, %v392
    %v394 = vpop.f32.mrb[0].mxu0
    %395 = vmatprep.mubr.f32.mxu0 0.0
    %396 = vmatmul.mubr.f32.gmra.mrb[0].mxu0 %v89
    %v397 = vpop.f32.mrb[0].mxu0
    %v398 = vadd.f32 0.0, %v397
    %v399 = vpop.f32.mrb[0].mxu0
    %400 = vmatprep.mubr.f32.mxu0 0.0
    %401 = vmatmul.mubr.f32.gmra.mrb[0].mxu0 %v90
    %v402 = vpop.f32.mrb[0].mxu0
    %v403 = vadd.f32 0.0, %v402
    %v404 = vpop.f32.mrb[0].mxu0
    %405 = vmatprep.mubr.f32.mxu0 0.0
    %406 = vmatmul.mubr.f32.gmra.mrb[0].mxu0 %v91
    %v407 = vpop.f32.mrb[0].mxu0
    %v408 = vadd.f32 0.0, %v407
    %v409 = vpop.f32.mrb[0].mxu0
    %410 = vmatprep.mubr.f32.mxu0 0.0
    %411 = vmatmul.mubr.f32.gmra.mrb[0].mxu0 %v92
    %v412 = vpop.f32.mrb[0].mxu0
    %v413 = vadd.f32 0.0, %v412
    %v414 = vpop.f32.mrb[0].mxu0
    %415 = vmatprep.mubr.f32.mxu0 0.0
    %416 = vmatmul.mubr.f32.gmra.mrb[0].mxu0 %v93
    %v417 = vpop.f32.mrb[0].mxu0
    %v418 = vadd.f32 0.0, %v417
    %v419 = vpop.f32.mrb[0].mxu0
    %420 = vmatprep.mubr.f32.mxu0 0.0
    %421 = vmatmul.mubr.f32.gmra.mrb[0].mxu0 %v94
    %v422 = vpop.f32.mrb[0].mxu0
    %v423 = vadd.f32 0.0, %v422
    %v424 = vpop.f32.mrb[0].mxu0
    %425 = vmatprep.mubr.f32.mxu0 0.0
    %426 = vmatmul.mubr.f32.gmra.mrb[0].mxu0 %v95
    %v427 = vpop.f32.mrb[0].mxu0
    %v428 = vadd.f32 0.0, %v427
    %v429 = vpop.f32.mrb[0].mxu0
    %430 = vmatprep.mubr.f32.mxu0 0.0
    %431 = vmatmul.mubr.f32.gmra.mrb[0].mxu0 %v96
    %v432 = vpop.f32.mrb[0].mxu0
    %v433 = vadd.f32 0.0, %v432
    %v434 = vpop.f32.mrb[0].mxu0
    %435 = vmatprep.mubr.f32.mxu0 0.0
    %436 = vmatmul.mubr.f32.gmra.mrb[0].mxu0 %v97
    %v437 = vpop.f32.mrb[0].mxu0
    %v438 = vadd.f32 0.0, %v437
    %v439 = vpop.f32.mrb[0].mxu0
    %440 = vmatprep.mubr.f32.mxu0 0.0
    %441 = vmatmul.mubr.f32.gmra.mrb[0].mxu0 %v98
    %v442 = vpop.f32.mrb[0].mxu0
    %v443 = vadd.f32 0.0, %v442
    %v444 = vpop.f32.mrb[0].mxu0
    %445 = vmatprep.mubr.f32.mxu0 0.0
    %446 = vmatmul.mubr.f32.gmra.mrb[0].mxu0 %v99
    %v447 = vpop.f32.mrb[0].mxu0
    %v448 = vadd.f32 0.0, %v447
    %v449 = vpop.f32.mrb[0].mxu0
    %450 = vmatprep.mubr.f32.mxu0 0.0
    %451 = vmatmul.mubr.f32.gmra.mrb[0].mxu0 %v100
    %v452 = vpop.f32.mrb[0].mxu0
    %v453 = vadd.f32 0.0, %v452
    %v454 = vpop.f32.mrb[0].mxu0
    %455 = vmatprep.mubr.f32.mxu0 0.0
    %456 = vmatmul.mubr.f32.gmra.mrb[0].mxu0 %v101
    %v457 = vpop.f32.mrb[0].mxu0
    %v458 = vadd.f32 0.0, %v457
    %v459 = vpop.f32.mrb[0].mxu0
    %460 = vmatprep.mubr.f32.mxu0 0.0
    %461 = vmatmul.mubr.f32.gmra.mrb[0].mxu0 %v102
    %v462 = vpop.f32.mrb[0].mxu0
    %v463 = vadd.f32 0.0, %v462
    %v464 = vpop.f32.mrb[0].mxu0
    %465 = vmatprep.mubr.f32.mxu0 0.0
    %466 = vmatmul.mubr.f32.gmra.mrb[0].mxu0 %v103
    %v467 = vpop.f32.mrb[0].mxu0
    %v468 = vadd.f32 0.0, %v467
    %v469 = vpop.f32.mrb[0].mxu0
    %470 = vmatprep.mubr.f32.mxu0 0.0
    %471 = vmatmul.mubr.f32.gmra.mrb[0].mxu0 %v104
    %v472 = vpop.f32.mrb[0].mxu0
    %v473 = vadd.f32 0.0, %v472
    %v474 = vpop.f32.mrb[0].mxu0
    %475 = vmatprep.mubr.f32.mxu0 0.0
    %476 = vmatmul.mubr.f32.gmra.mrb[0].mxu0 %v105
    %v477 = vpop.f32.mrb[0].mxu0
    %v478 = vadd.f32 0.0, %v477
    %v479 = vpop.f32.mrb[0].mxu0
    %480 = vmatprep.mubr.f32.mxu0 0.0
    %481 = vmatmul.mubr.f32.gmra.mrb[0].mxu0 %v106
    %v482 = vpop.f32.mrb[0].mxu0
    %v483 = vadd.f32 0.0, %v482
    %v484 = vpop.f32.mrb[0].mxu0
    %485 = vmatprep.mubr.f32.mxu0 0.0
    %486 = vmatmul.mubr.f32.gmra.mrb[0].mxu0 %v107
    %v487 = vpop.f32.mrb[0].mxu0
    %v488 = vadd.f32 0.0, %v487
    %v489 = vpop.f32.mrb[0].mxu0
    %490 = vmatprep.mubr.f32.mxu0 0.0
    %491 = vmatmul.mubr.f32.gmra.mrb[0].mxu0 %v108
    %v492 = vpop.f32.mrb[0].mxu0
    %v493 = vadd.f32 0.0, %v492
    %v494 = vpop.f32.mrb[0].mxu0
    %495 = vmatprep.mubr.f32.mxu0 0.0
    %496 = vmatmul.mubr.f32.gmra.mrb[0].mxu0 %v109
    %v497 = vpop.f32.mrb[0].mxu0
    %v498 = vadd.f32 0.0, %v497
    %v499 = vpop.f32.mrb[0].mxu0
    %500 = vmatprep.mubr.f32.mxu0 0.0
    %501 = vmatmul.mubr.f32.gmra.mrb[0].mxu0 %v110
    %v502 = vpop.f32.mrb[0].mxu0
    %v503 = vadd.f32 0.0, %v502
    %v504 = vpop.f32.mrb[0].mxu0
    %505 = vmatprep.mubr.f32.mxu0 0.0
    %506 = vmatmul.mubr.f32.gmra.mrb[0].mxu0 %v111
    %v507 = vpop.f32.mrb[0].mxu0
    %v508 = vadd.f32 0.0, %v507
    %v509 = vpop.f32.mrb[0].mxu0
    %510 = vmatprep.mubr.f32.mxu0 0.0
    %511 = vmatmul.mubr.f32.gmra.mrb[0].mxu0 %v112
    %v512 = vpop.f32.mrb[0].mxu0
    %v513 = vadd.f32 0.0, %v512
    %v514 = vpop.f32.mrb[0].mxu0
    %515 = vmatprep.mubr.f32.mxu0 0.0
    %516 = vmatmul.mubr.f32.gmra.mrb[0].mxu0 %v113
    %v517 = vpop.f32.mrb[0].mxu0
    %v518 = vadd.f32 0.0, %v517
    %v519 = vpop.f32.mrb[0].mxu0
    %520 = vmatprep.mubr.f32.mxu0 0.0
    %521 = vmatmul.mubr.f32.gmra.mrb[0].mxu0 %v114
    %v522 = vpop.f32.mrb[0].mxu0
    %v523 = vadd.f32 0.0, %v522
    %v524 = vpop.f32.mrb[0].mxu0
    %525 = vmatprep.mubr.f32.mxu0 0.0
    %526 = vmatmul.mubr.f32.gmra.mrb[0].mxu0 %v115
    %v527 = vpop.f32.mrb[0].mxu0
    %v528 = vadd.f32 0.0, %v527
    %v529 = vpop.f32.mrb[0].mxu0
    %530 = vmatprep.mubr.f32.mxu0 0.0
    %531 = vmatmul.mubr.f32.gmra.mrb[0].mxu0 %v116
    %v532 = vpop.f32.mrb[0].mxu0
    %v533 = vadd.f32 0.0, %v532
    %v534 = vpop.f32.mrb[0].mxu0
    %535 = vmatprep.mubr.f32.mxu0 0.0
    %536 = vmatmul.mubr.f32.gmra.mrb[0].mxu0 %v117
    %v537 = vpop.f32.mrb[0].mxu0
    %v538 = vadd.f32 0.0, %v537
    %v539 = vpop.f32.mrb[0].mxu0
    %540 = vmatprep.mubr.f32.mxu0 0.0
    %541 = vmatmul.mubr.f32.gmra.mrb[0].mxu0 %v118
    %v542 = vpop.f32.mrb[0].mxu0
    %v543 = vadd.f32 0.0, %v542
    %v544 = vpop.f32.mrb[0].mxu0
    %545 = vmatprep.mubr.f32.mxu0 0.0
    %546 = vmatmul.mubr.f32.gmra.mrb[0].mxu0 %v119
    %v547 = vpop.f32.mrb[0].mxu0
    %v548 = vadd.f32 0.0, %v547
    %v549 = vpop.f32.mrb[0].mxu0
    %550 = vmatprep.mubr.f32.mxu0 0.0
    %551 = vmatmul.mubr.f32.gmra.mrb[0].mxu0 %v120
    %v552 = vpop.f32.mrb[0].mxu0
    %v553 = vadd.f32 0.0, %v552
    %v554 = vpop.f32.mrb[0].mxu0
    %555 = vmatprep.mubr.f32.mxu0 0.0
    %556 = vmatmul.mubr.f32.gmra.mrb[0].mxu0 %v121
    %v557 = vpop.f32.mrb[0].mxu0
    %v558 = vadd.f32 0.0, %v557
    %v559 = vpop.f32.mrb[0].mxu0
    %560 = vmatprep.mubr.f32.mxu0 0.0
    %561 = vmatmul.mubr.f32.gmra.mrb[0].mxu0 %v122
    %v562 = vpop.f32.mrb[0].mxu0
    %v563 = vadd.f32 0.0, %v562
    %v564 = vpop.f32.mrb[0].mxu0
    %565 = vmatprep.mubr.f32.mxu0 0.0
    %566 = vmatmul.mubr.f32.gmra.mrb[0].mxu0 %v123
    %v567 = vpop.f32.mrb[0].mxu0
    %v568 = vadd.f32 0.0, %v567
    %v569 = vpop.f32.mrb[0].mxu0
    %570 = vmatprep.mubr.f32.mxu0 0.0
    %571 = vmatmul.mubr.f32.gmra.mrb[0].mxu0 %v124
    %v572 = vpop.f32.mrb[0].mxu0
    %v573 = vadd.f32 0.0, %v572
    %v574 = vpop.f32.mrb[0].mxu0
    %575 = vmatprep.mubr.f32.mxu0 0.0
    %576 = vmatmul.mubr.f32.gmra.mrb[0].mxu0 %v125
    %v577 = vpop.f32.mrb[0].mxu0
    %v578 = vadd.f32 0.0, %v577
    %v579 = vpop.f32.mrb[0].mxu0
    %580 = vmatprep.mubr.f32.mxu0 0.0
    %581 = vmatmul.mubr.f32.gmra.mrb[0].mxu0 %v126
    %v582 = vpop.f32.mrb[0].mxu0
    %v583 = vadd.f32 0.0, %v582
    %v584 = vpop.f32.mrb[0].mxu0
    %585 = vmatprep.mubr.f32.mxu0 0.0
    %586 = vmatmul.mubr.f32.gmra.mrb[0].mxu0 %v127
    %v587 = vpop.f32.mrb[0].mxu0
    %v588 = vadd.f32 0.0, %v587
    %v589 = vpop.f32.mrb[0].mxu0
    %590 = vmatprep.mubr.f32.mxu0 0.0
    %591 = vmatmul.mubr.f32.gmra.mrb[0].mxu0 %v128
    %v592 = vpop.f32.mrb[0].mxu0
    %v593 = vadd.f32 0.0, %v592
    %v594 = vpop.f32.mrb[0].mxu0
    %595 = vdwg.mxu0
    %v596 = vtanh.pop %v278
    %v597 = vtanh.pop %v283
    %v598 = vtanh.pop %v288
    %v599 = vtanh.pop %v293
    %v600 = vtanh.pop %v298
    %v601 = vtanh.pop %v303
    %v602 = vtanh.pop %v308
    %v603 = vtanh.pop %v313
    %v604 = vtanh.pop %v318
    %v605 = vtanh.pop %v323
    %v606 = vtanh.pop %v328
    %v607 = vtanh.pop %v333
    %v608 = vtanh.pop %v338
    %v609 = vtanh.pop %v343
    %v610 = vtanh.pop %v348
    %v611 = vtanh.pop %v353
    %v612 = vtanh.pop %v358
    %v613 = vtanh.pop %v363
    %v614 = vtanh.pop %v368
    %v615 = vtanh.pop %v373
    %v616 = vtanh.pop %v378
    %v617 = vtanh.pop %v383
    %v618 = vtanh.pop %v388
    %v619 = vtanh.pop %v393
    %v620 = vtanh.pop %v398
    %v621 = vtanh.pop %v403
    %v622 = vtanh.pop %v408
    %v623 = vtanh.pop %v413
    %v624 = vtanh.pop %v418
    %v625 = vtanh.pop %v423
    %v626 = vtanh.pop %v428
    %v627 = vtanh.pop %v433
    %v628 = vtanh.pop %v438
    %v629 = vtanh.pop %v443
    %v630 = vtanh.pop %v448
    %v631 = vtanh.pop %v453
    %v632 = vtanh.pop %v458
    %v633 = vtanh.pop %v463
    %v634 = vtanh.pop %v468
    %v635 = vtanh.pop %v473
    %v636 = vtanh.pop %v478
    %v637 = vtanh.pop %v483
    %v638 = vtanh.pop %v488
    %v639 = vtanh.pop %v493
    %v640 = vtanh.pop %v498
    %v641 = vtanh.pop %v503
    %v642 = vtanh.pop %v508
    %v643 = vtanh.pop %v513
    %v644 = vtanh.pop %v518
    %v645 = vtanh.pop %v523
    %v646 = vtanh.pop %v528
    %v647 = vtanh.pop %v533
    %v648 = vtanh.pop %v538
    %v649 = vtanh.pop %v543
    %v650 = vtanh.pop %v548
    %v651 = vtanh.pop %v553
    %v652 = vtanh.pop %v558
    %v653 = vtanh.pop %v563
    %v654 = vtanh.pop %v568
    %v655 = vtanh.pop %v573
    %v656 = vtanh.pop %v578
    %v657 = vtanh.pop %v583
    %v658 = vtanh.pop %v588
    %v659 = vtanh.pop %v593
    %660 = vmatprep.subr.mxu0 0.0
    %661 = vmatpush1.xpose.msra.mxu0 %v193
    %662 = vmatprep.subr.mxu0 0.0
    %663 = vmatpush1.xpose.msra.mxu0 %v194
    %664 = vmatprep.subr.mxu0 0.0
    %665 = vmatpush1.xpose.msra.mxu0 %v195
    %666 = vmatprep.subr.mxu0 0.0
    %667 = vmatpush1.xpose.msra.mxu0 %v196
    %668 = vmatprep.subr.mxu0 0.0
    %669 = vmatpush1.xpose.msra.mxu0 %v197
    %670 = vmatprep.subr.mxu0 0.0
    %671 = vmatpush1.xpose.msra.mxu0 %v198
    %672 = vmatprep.subr.mxu0 0.0
    %673 = vmatpush1.xpose.msra.mxu0 %v199
    %674 = vmatprep.subr.mxu0 0.0
    %675 = vmatpush1.xpose.msra.mxu0 %v200
    %676 = vmatprep.subr.mxu0 0.0
    %677 = vmatpush1.xpose.msra.mxu0 %v201
    %678 = vmatprep.subr.mxu0 0.0
    %679 = vmatpush1.xpose.msra.mxu0 %v202
    %680 = vmatprep.subr.mxu0 0.0
    %681 = vmatpush1.xpose.msra.mxu0 %v203
    %682 = vmatprep.subr.mxu0 0.0
    %683 = vmatpush1.xpose.msra.mxu0 %v204
    %684 = vmatprep.subr.mxu0 0.0
    %685 = vmatpush1.xpose.msra.mxu0 %v205
    %686 = vmatprep.subr.mxu0 0.0
    %687 = vmatpush1.xpose.msra.mxu0 %v206
    %688 = vmatprep.subr.mxu0 0.0
    %689 = vmatpush1.xpose.msra.mxu0 %v207
    %690 = vmatprep.subr.mxu0 0.0
    %691 = vmatpush1.xpose.msra.mxu0 %v208
    %692 = vmatprep.subr.mxu0 0.0
    %693 = vmatpush1.xpose.msra.mxu0 0.0
    %694 = vmatprep.subr.mxu0 0.0
    %695 = vmatpush1.xpose.msra.mxu0 0.0
    %696 = vmatprep.subr.mxu0 0.0
    %697 = vmatpush1.xpose.msra.mxu0 0.0
    %698 = vmatprep.subr.mxu0 0.0
    %699 = vmatpush1.xpose.msra.mxu0 0.0
    %700 = vmatprep.subr.mxu0 0.0
    %701 = vmatpush1.xpose.msra.mxu0 0.0
    %702 = vmatprep.subr.mxu0 0.0
    %703 = vmatpush1.xpose.msra.mxu0 0.0
    %704 = vmatprep.subr.mxu0 0.0
    %705 = vmatpush1.xpose.msra.mxu0 0.0
    %706 = vmatprep.subr.mxu0 0.0
    %707 = vmatpush1.xpose.msra.mxu0 0.0
    %708 = vmatprep.subr.mxu0 0.0
    %709 = vmatpush1.xpose.msra.mxu0 0.0
    %710 = vmatprep.subr.mxu0 0.0
    %711 = vmatpush1.xpose.msra.mxu0 0.0
    %712 = vmatprep.subr.mxu0 0.0
    %713 = vmatpush1.xpose.msra.mxu0 0.0
    %714 = vmatprep.subr.mxu0 0.0
    %715 = vmatpush1.xpose.msra.mxu0 0.0
    %716 = vmatprep.subr.mxu0 0.0
    %717 = vmatpush1.xpose.msra.mxu0 0.0
    %718 = vmatprep.subr.mxu0 0.0
    %719 = vmatpush1.xpose.msra.mxu0 0.0
    %720 = vmatprep.subr.mxu0 0.0
    %721 = vmatpush1.xpose.msra.mxu0 0.0
    %722 = vmatprep.subr.mxu0 0.0
    %723 = vmatpush1.xpose.msra.mxu0 0.0
    %724 = vmatprep.mubr.f32.mxu0 0.0
    %725 = vmatmul.mubr.f32.gmra.mrb[0].mxu0 %v129
    %v726 = vpop.f32.mrb[0].mxu0
    %v727 = vadd.f32 0.0, %v726
    %v728 = vpop.f32.mrb[0].mxu0
    %729 = vmatprep.mubr.f32.mxu0 0.0
    %730 = vmatmul.mubr.f32.gmra.mrb[0].mxu0 %v130
    %v731 = vpop.f32.mrb[0].mxu0
    %v732 = vadd.f32 0.0, %v731
    %v733 = vpop.f32.mrb[0].mxu0
    %734 = vmatprep.mubr.f32.mxu0 0.0
    %735 = vmatmul.mubr.f32.gmra.mrb[0].mxu0 %v131
    %v736 = vpop.f32.mrb[0].mxu0
    %v737 = vadd.f32 0.0, %v736
    %v738 = vpop.f32.mrb[0].mxu0
    %739 = vmatprep.mubr.f32.mxu0 0.0
    %740 = vmatmul.mubr.f32.gmra.mrb[0].mxu0 %v132
    %v741 = vpop.f32.mrb[0].mxu0
    %v742 = vadd.f32 0.0, %v741
    %v743 = vpop.f32.mrb[0].mxu0
    %744 = vmatprep.mubr.f32.mxu0 0.0
    %745 = vmatmul.mubr.f32.gmra.mrb[0].mxu0 %v133
    %v746 = vpop.f32.mrb[0].mxu0
    %v747 = vadd.f32 0.0, %v746
    %v748 = vpop.f32.mrb[0].mxu0
    %749 = vmatprep.mubr.f32.mxu0 0.0
    %750 = vmatmul.mubr.f32.gmra.mrb[0].mxu0 %v134
    %v751 = vpop.f32.mrb[0].mxu0
    %v752 = vadd.f32 0.0, %v751
    %v753 = vpop.f32.mrb[0].mxu0
    %754 = vmatprep.mubr.f32.mxu0 0.0
    %755 = vmatmul.mubr.f32.gmra.mrb[0].mxu0 %v135
    %v756 = vpop.f32.mrb[0].mxu0
    %v757 = vadd.f32 0.0, %v756
    %v758 = vpop.f32.mrb[0].mxu0
    %759 = vmatprep.mubr.f32.mxu0 0.0
    %760 = vmatmul.mubr.f32.gmra.mrb[0].mxu0 %v136
    %v761 = vpop.f32.mrb[0].mxu0
    %v762 = vadd.f32 0.0, %v761
    %v763 = vpop.f32.mrb[0].mxu0
    %764 = vmatprep.mubr.f32.mxu0 0.0
    %765 = vmatmul.mubr.f32.gmra.mrb[0].mxu0 %v137
    %v766 = vpop.f32.mrb[0].mxu0
    %v767 = vadd.f32 0.0, %v766
    %v768 = vpop.f32.mrb[0].mxu0
    %769 = vmatprep.mubr.f32.mxu0 0.0
    %770 = vmatmul.mubr.f32.gmra.mrb[0].mxu0 %v138
    %v771 = vpop.f32.mrb[0].mxu0
    %v772 = vadd.f32 0.0, %v771
    %v773 = vpop.f32.mrb[0].mxu0
    %774 = vmatprep.mubr.f32.mxu0 0.0
    %775 = vmatmul.mubr.f32.gmra.mrb[0].mxu0 %v139
    %v776 = vpop.f32.mrb[0].mxu0
    %v777 = vadd.f32 0.0, %v776
    %v778 = vpop.f32.mrb[0].mxu0
    %779 = vmatprep.mubr.f32.mxu0 0.0
    %780 = vmatmul.mubr.f32.gmra.mrb[0].mxu0 %v140
    %v781 = vpop.f32.mrb[0].mxu0
    %v782 = vadd.f32 0.0, %v781
    %v783 = vpop.f32.mrb[0].mxu0
    %784 = vmatprep.mubr.f32.mxu0 0.0
    %785 = vmatmul.mubr.f32.gmra.mrb[0].mxu0 %v141
    %v786 = vpop.f32.mrb[0].mxu0
    %v787 = vadd.f32 0.0, %v786
    %v788 = vpop.f32.mrb[0].mxu0
    %789 = vmatprep.mubr.f32.mxu0 0.0
    %790 = vmatmul.mubr.f32.gmra.mrb[0].mxu0 %v142
    %v791 = vpop.f32.mrb[0].mxu0
    %v792 = vadd.f32 0.0, %v791
    %v793 = vpop.f32.mrb[0].mxu0
    %794 = vmatprep.mubr.f32.mxu0 0.0
    %795 = vmatmul.mubr.f32.gmra.mrb[0].mxu0 %v143
    %v796 = vpop.f32.mrb[0].mxu0
    %v797 = vadd.f32 0.0, %v796
    %v798 = vpop.f32.mrb[0].mxu0
    %799 = vmatprep.mubr.f32.mxu0 0.0
    %800 = vmatmul.mubr.f32.gmra.mrb[0].mxu0 %v144
    %v801 = vpop.f32.mrb[0].mxu0
    %v802 = vadd.f32 0.0, %v801
    %v803 = vpop.f32.mrb[0].mxu0
    %804 = vmatprep.mubr.f32.mxu0 0.0
    %805 = vmatmul.mubr.f32.gmra.mrb[0].mxu0 %v145
    %v806 = vpop.f32.mrb[0].mxu0
    %v807 = vadd.f32 0.0, %v806
    %v808 = vpop.f32.mrb[0].mxu0
    %809 = vmatprep.mubr.f32.mxu0 0.0
    %810 = vmatmul.mubr.f32.gmra.mrb[0].mxu0 %v146
    %v811 = vpop.f32.mrb[0].mxu0
    %v812 = vadd.f32 0.0, %v811
    %v813 = vpop.f32.mrb[0].mxu0
    %814 = vmatprep.mubr.f32.mxu0 0.0
    %815 = vmatmul.mubr.f32.gmra.mrb[0].mxu0 %v147
    %v816 = vpop.f32.mrb[0].mxu0
    %v817 = vadd.f32 0.0, %v816
    %v818 = vpop.f32.mrb[0].mxu0
    %819 = vmatprep.mubr.f32.mxu0 0.0
    %820 = vmatmul.mubr.f32.gmra.mrb[0].mxu0 %v148
    %v821 = vpop.f32.mrb[0].mxu0
    %v822 = vadd.f32 0.0, %v821
    %v823 = vpop.f32.mrb[0].mxu0
    %824 = vmatprep.mubr.f32.mxu0 0.0
    %825 = vmatmul.mubr.f32.gmra.mrb[0].mxu0 %v149
    %v826 = vpop.f32.mrb[0].mxu0
    %v827 = vadd.f32 0.0, %v826
    %v828 = vpop.f32.mrb[0].mxu0
    %829 = vmatprep.mubr.f32.mxu0 0.0
    %830 = vmatmul.mubr.f32.gmra.mrb[0].mxu0 %v150
    %v831 = vpop.f32.mrb[0].mxu0
    %v832 = vadd.f32 0.0, %v831
    %v833 = vpop.f32.mrb[0].mxu0
    %834 = vmatprep.mubr.f32.mxu0 0.0
    %835 = vmatmul.mubr.f32.gmra.mrb[0].mxu0 %v151
    %v836 = vpop.f32.mrb[0].mxu0
    %v837 = vadd.f32 0.0, %v836
    %v838 = vpop.f32.mrb[0].mxu0
    %839 = vmatprep.mubr.f32.mxu0 0.0
    %840 = vmatmul.mubr.f32.gmra.mrb[0].mxu0 %v152
    %v841 = vpop.f32.mrb[0].mxu0
    %v842 = vadd.f32 0.0, %v841
    %v843 = vpop.f32.mrb[0].mxu0
    %844 = vmatprep.mubr.f32.mxu0 0.0
    %845 = vmatmul.mubr.f32.gmra.mrb[0].mxu0 %v153
    %v846 = vpop.f32.mrb[0].mxu0
    %v847 = vadd.f32 0.0, %v846
    %v848 = vpop.f32.mrb[0].mxu0
    %849 = vmatprep.mubr.f32.mxu0 0.0
    %850 = vmatmul.mubr.f32.gmra.mrb[0].mxu0 %v154
    %v851 = vpop.f32.mrb[0].mxu0
    %v852 = vadd.f32 0.0, %v851
    %v853 = vpop.f32.mrb[0].mxu0
    %854 = vmatprep.mubr.f32.mxu0 0.0
    %855 = vmatmul.mubr.f32.gmra.mrb[0].mxu0 %v155
    %v856 = vpop.f32.mrb[0].mxu0
    %v857 = vadd.f32 0.0, %v856
    %v858 = vpop.f32.mrb[0].mxu0
    %859 = vmatprep.mubr.f32.mxu0 0.0
    %860 = vmatmul.mubr.f32.gmra.mrb[0].mxu0 %v156
    %v861 = vpop.f32.mrb[0].mxu0
    %v862 = vadd.f32 0.0, %v861
    %v863 = vpop.f32.mrb[0].mxu0
    %864 = vmatprep.mubr.f32.mxu0 0.0
    %865 = vmatmul.mubr.f32.gmra.mrb[0].mxu0 %v157
    %v866 = vpop.f32.mrb[0].mxu0
    %v867 = vadd.f32 0.0, %v866
    %v868 = vpop.f32.mrb[0].mxu0
    %869 = vmatprep.mubr.f32.mxu0 0.0
    %870 = vmatmul.mubr.f32.gmra.mrb[0].mxu0 %v158
    %v871 = vpop.f32.mrb[0].mxu0
    %v872 = vadd.f32 0.0, %v871
    %v873 = vpop.f32.mrb[0].mxu0
    %874 = vmatprep.mubr.f32.mxu0 0.0
    %875 = vmatmul.mubr.f32.gmra.mrb[0].mxu0 %v159
    %v876 = vpop.f32.mrb[0].mxu0
    %v877 = vadd.f32 0.0, %v876
    %v878 = vpop.f32.mrb[0].mxu0
    %879 = vmatprep.mubr.f32.mxu0 0.0
    %880 = vmatmul.mubr.f32.gmra.mrb[0].mxu0 %v160
    %v881 = vpop.f32.mrb[0].mxu0
    %v882 = vadd.f32 0.0, %v881
    %v883 = vpop.f32.mrb[0].mxu0
    %884 = vmatprep.mubr.f32.mxu0 0.0
    %885 = vmatmul.mubr.f32.gmra.mrb[0].mxu0 %v161
    %v886 = vpop.f32.mrb[0].mxu0
    %v887 = vadd.f32 0.0, %v886
    %v888 = vpop.f32.mrb[0].mxu0
    %889 = vmatprep.mubr.f32.mxu0 0.0
    %890 = vmatmul.mubr.f32.gmra.mrb[0].mxu0 %v162
    %v891 = vpop.f32.mrb[0].mxu0
    %v892 = vadd.f32 0.0, %v891
    %v893 = vpop.f32.mrb[0].mxu0
    %894 = vmatprep.mubr.f32.mxu0 0.0
    %895 = vmatmul.mubr.f32.gmra.mrb[0].mxu0 %v163
    %v896 = vpop.f32.mrb[0].mxu0
    %v897 = vadd.f32 0.0, %v896
    %v898 = vpop.f32.mrb[0].mxu0
    %899 = vmatprep.mubr.f32.mxu0 0.0
    %900 = vmatmul.mubr.f32.gmra.mrb[0].mxu0 %v164
    %v901 = vpop.f32.mrb[0].mxu0
    %v902 = vadd.f32 0.0, %v901
    %v903 = vpop.f32.mrb[0].mxu0
    %904 = vmatprep.mubr.f32.mxu0 0.0
    %905 = vmatmul.mubr.f32.gmra.mrb[0].mxu0 %v165
    %v906 = vpop.f32.mrb[0].mxu0
    %v907 = vadd.f32 0.0, %v906
    %v908 = vpop.f32.mrb[0].mxu0
    %909 = vmatprep.mubr.f32.mxu0 0.0
    %910 = vmatmul.mubr.f32.gmra.mrb[0].mxu0 %v166
    %v911 = vpop.f32.mrb[0].mxu0
    %v912 = vadd.f32 0.0, %v911
    %v913 = vpop.f32.mrb[0].mxu0
    %914 = vmatprep.mubr.f32.mxu0 0.0
    %915 = vmatmul.mubr.f32.gmra.mrb[0].mxu0 %v167
    %v916 = vpop.f32.mrb[0].mxu0
    %v917 = vadd.f32 0.0, %v916
    %v918 = vpop.f32.mrb[0].mxu0
    %919 = vmatprep.mubr.f32.mxu0 0.0
    %920 = vmatmul.mubr.f32.gmra.mrb[0].mxu0 %v168
    %v921 = vpop.f32.mrb[0].mxu0
    %v922 = vadd.f32 0.0, %v921
    %v923 = vpop.f32.mrb[0].mxu0
    %924 = vmatprep.mubr.f32.mxu0 0.0
    %925 = vmatmul.mubr.f32.gmra.mrb[0].mxu0 %v169
    %v926 = vpop.f32.mrb[0].mxu0
    %v927 = vadd.f32 0.0, %v926
    %v928 = vpop.f32.mrb[0].mxu0
    %929 = vmatprep.mubr.f32.mxu0 0.0
    %930 = vmatmul.mubr.f32.gmra.mrb[0].mxu0 %v170
    %v931 = vpop.f32.mrb[0].mxu0
    %v932 = vadd.f32 0.0, %v931
    %v933 = vpop.f32.mrb[0].mxu0
    %934 = vmatprep.mubr.f32.mxu0 0.0
    %935 = vmatmul.mubr.f32.gmra.mrb[0].mxu0 %v171
    %v936 = vpop.f32.mrb[0].mxu0
    %v937 = vadd.f32 0.0, %v936
    %v938 = vpop.f32.mrb[0].mxu0
    %939 = vmatprep.mubr.f32.mxu0 0.0
    %940 = vmatmul.mubr.f32.gmra.mrb[0].mxu0 %v172
    %v941 = vpop.f32.mrb[0].mxu0
    %v942 = vadd.f32 0.0, %v941
    %v943 = vpop.f32.mrb[0].mxu0
    %944 = vmatprep.mubr.f32.mxu0 0.0
    %945 = vmatmul.mubr.f32.gmra.mrb[0].mxu0 %v173
    %v946 = vpop.f32.mrb[0].mxu0
    %v947 = vadd.f32 0.0, %v946
    %v948 = vpop.f32.mrb[0].mxu0
    %949 = vmatprep.mubr.f32.mxu0 0.0
    %950 = vmatmul.mubr.f32.gmra.mrb[0].mxu0 %v174
    %v951 = vpop.f32.mrb[0].mxu0
    %v952 = vadd.f32 0.0, %v951
    %v953 = vpop.f32.mrb[0].mxu0
    %954 = vmatprep.mubr.f32.mxu0 0.0
    %955 = vmatmul.mubr.f32.gmra.mrb[0].mxu0 %v175
    %v956 = vpop.f32.mrb[0].mxu0
    %v957 = vadd.f32 0.0, %v956
    %v958 = vpop.f32.mrb[0].mxu0
    %959 = vmatprep.mubr.f32.mxu0 0.0
    %960 = vmatmul.mubr.f32.gmra.mrb[0].mxu0 %v176
    %v961 = vpop.f32.mrb[0].mxu0
    %v962 = vadd.f32 0.0, %v961
    %v963 = vpop.f32.mrb[0].mxu0
    %964 = vmatprep.mubr.f32.mxu0 0.0
    %965 = vmatmul.mubr.f32.gmra.mrb[0].mxu0 %v177
    %v966 = vpop.f32.mrb[0].mxu0
    %v967 = vadd.f32 0.0, %v966
    %v968 = vpop.f32.mrb[0].mxu0
    %969 = vmatprep.mubr.f32.mxu0 0.0
    %970 = vmatmul.mubr.f32.gmra.mrb[0].mxu0 %v178
    %v971 = vpop.f32.mrb[0].mxu0
    %v972 = vadd.f32 0.0, %v971
    %v973 = vpop.f32.mrb[0].mxu0
    %974 = vmatprep.mubr.f32.mxu0 0.0
    %975 = vmatmul.mubr.f32.gmra.mrb[0].mxu0 %v179
    %v976 = vpop.f32.mrb[0].mxu0
    %v977 = vadd.f32 0.0, %v976
    %v978 = vpop.f32.mrb[0].mxu0
    %979 = vmatprep.mubr.f32.mxu0 0.0
    %980 = vmatmul.mubr.f32.gmra.mrb[0].mxu0 %v180
    %v981 = vpop.f32.mrb[0].mxu0
    %v982 = vadd.f32 0.0, %v981
    %v983 = vpop.f32.mrb[0].mxu0
    %984 = vmatprep.mubr.f32.mxu0 0.0
    %985 = vmatmul.mubr.f32.gmra.mrb[0].mxu0 %v181
    %v986 = vpop.f32.mrb[0].mxu0
    %v987 = vadd.f32 0.0, %v986
    %v988 = vpop.f32.mrb[0].mxu0
    %989 = vmatprep.mubr.f32.mxu0 0.0
    %990 = vmatmul.mubr.f32.gmra.mrb[0].mxu0 %v182
    %v991 = vpop.f32.mrb[0].mxu0
    %v992 = vadd.f32 0.0, %v991
    %v993 = vpop.f32.mrb[0].mxu0
    %994 = vmatprep.mubr.f32.mxu0 0.0
    %995 = vmatmul.mubr.f32.gmra.mrb[0].mxu0 %v183
    %v996 = vpop.f32.mrb[0].mxu0
    %v997 = vadd.f32 0.0, %v996
    %v998 = vpop.f32.mrb[0].mxu0
    %999 = vmatprep.mubr.f32.mxu0 0.0
    %1000 = vmatmul.mubr.f32.gmra.mrb[0].mxu0 %v184
    %v1001 = vpop.f32.mrb[0].mxu0
    %v1002 = vadd.f32 0.0, %v1001
    %v1003 = vpop.f32.mrb[0].mxu0
    %1004 = vmatprep.mubr.f32.mxu0 0.0
    %1005 = vmatmul.mubr.f32.gmra.mrb[0].mxu0 %v185
    %v1006 = vpop.f32.mrb[0].mxu0
    %v1007 = vadd.f32 0.0, %v1006
    %v1008 = vpop.f32.mrb[0].mxu0
    %1009 = vmatprep.mubr.f32.mxu0 0.0
    %1010 = vmatmul.mubr.f32.gmra.mrb[0].mxu0 %v186
    %v1011 = vpop.f32.mrb[0].mxu0
    %v1012 = vadd.f32 0.0, %v1011
    %v1013 = vpop.f32.mrb[0].mxu0
    %1014 = vmatprep.mubr.f32.mxu0 0.0
    %1015 = vmatmul.mubr.f32.gmra.mrb[0].mxu0 %v187
    %v1016 = vpop.f32.mrb[0].mxu0
    %v1017 = vadd.f32 0.0, %v1016
    %v1018 = vpop.f32.mrb[0].mxu0
    %1019 = vmatprep.mubr.f32.mxu0 0.0
    %1020 = vmatmul.mubr.f32.gmra.mrb[0].mxu0 %v188
    %v1021 = vpop.f32.mrb[0].mxu0
    %v1022 = vadd.f32 0.0, %v1021
    %v1023 = vpop.f32.mrb[0].mxu0
    %1024 = vmatprep.mubr.f32.mxu0 0.0
    %1025 = vmatmul.mubr.f32.gmra.mrb[0].mxu0 %v189
    %v1026 = vpop.f32.mrb[0].mxu0
    %v1027 = vadd.f32 0.0, %v1026
    %v1028 = vpop.f32.mrb[0].mxu0
    %1029 = vmatprep.mubr.f32.mxu0 0.0
    %1030 = vmatmul.mubr.f32.gmra.mrb[0].mxu0 %v190
    %v1031 = vpop.f32.mrb[0].mxu0
    %v1032 = vadd.f32 0.0, %v1031
    %v1033 = vpop.f32.mrb[0].mxu0
    %1034 = vmatprep.mubr.f32.mxu0 0.0
    %1035 = vmatmul.mubr.f32.gmra.mrb[0].mxu0 %v191
    %v1036 = vpop.f32.mrb[0].mxu0
    %v1037 = vadd.f32 0.0, %v1036
    %v1038 = vpop.f32.mrb[0].mxu0
    %1039 = vmatprep.mubr.f32.mxu0 0.0
    %1040 = vmatmul.mubr.f32.gmra.mrb[0].mxu0 %v192
    %v1041 = vpop.f32.mrb[0].mxu0
    %v1042 = vadd.f32 0.0, %v1041
    %v1043 = vpop.f32.mrb[0].mxu0
    %1044 = vdwg.mxu0
    %v1045 = vtanh.pop %v727
    %v1046 = vtanh.pop %v732
    %v1047 = vtanh.pop %v737
    %v1048 = vtanh.pop %v742
    %v1049 = vtanh.pop %v747
    %v1050 = vtanh.pop %v752
    %v1051 = vtanh.pop %v757
    %v1052 = vtanh.pop %v762
    %v1053 = vtanh.pop %v767
    %v1054 = vtanh.pop %v772
    %v1055 = vtanh.pop %v777
    %v1056 = vtanh.pop %v782
    %v1057 = vtanh.pop %v787
    %v1058 = vtanh.pop %v792
    %v1059 = vtanh.pop %v797
    %v1060 = vtanh.pop %v802
    %v1061 = vtanh.pop %v807
    %v1062 = vtanh.pop %v812
    %v1063 = vtanh.pop %v817
    %v1064 = vtanh.pop %v822
    %v1065 = vtanh.pop %v827
    %v1066 = vtanh.pop %v832
    %v1067 = vtanh.pop %v837
    %v1068 = vtanh.pop %v842
    %v1069 = vtanh.pop %v847
    %v1070 = vtanh.pop %v852
    %v1071 = vtanh.pop %v857
    %v1072 = vtanh.pop %v862
    %v1073 = vtanh.pop %v867
    %v1074 = vtanh.pop %v872
    %v1075 = vtanh.pop %v877
    %v1076 = vtanh.pop %v882
    %v1077 = vtanh.pop %v887
    %v1078 = vtanh.pop %v892
    %v1079 = vtanh.pop %v897
    %v1080 = vtanh.pop %v902
    %v1081 = vtanh.pop %v907
    %v1082 = vtanh.pop %v912
    %v1083 = vtanh.pop %v917
    %v1084 = vtanh.pop %v922
    %v1085 = vtanh.pop %v927
    %v1086 = vtanh.pop %v932
    %v1087 = vtanh.pop %v937
    %v1088 = vtanh.pop %v942
    %v1089 = vtanh.pop %v947
    %v1090 = vtanh.pop %v952
    %v1091 = vtanh.pop %v957
    %v1092 = vtanh.pop %v962
    %v1093 = vtanh.pop %v967
    %v1094 = vtanh.pop %v972
    %v1095 = vtanh.pop %v977
    %v1096 = vtanh.pop %v982
    %v1097 = vtanh.pop %v987
    %v1098 = vtanh.pop %v992
    %v1099 = vtanh.pop %v997
    %v1100 = vtanh.pop %v1002
    %v1101 = vtanh.pop %v1007
    %v1102 = vtanh.pop %v1012
    %v1103 = vtanh.pop %v1017
    %v1104 = vtanh.pop %v1022
    %v1105 = vtanh.pop %v1027
    %v1106 = vtanh.pop %v1032
    %v1107 = vtanh.pop %v1037
    %v1108 = vtanh.pop %v1042
    %v1110 = vlaneseq
    %v1111 = vshrl.u32 %v1110, 7
    %v1112 = vsub.s32 0, %v1111
    %v1113 = vrot.slane %v209, %v1112
    %v1115 = vmul.f32 %v596, %v1113
    %v1116 = vmul.f32 %v597, %v1113
    %v1117 = vmul.f32 %v598, %v1113
    %v1118 = vmul.f32 %v599, %v1113
    %v1119 = vmul.f32 %v600, %v1113
    %v1120 = vmul.f32 %v601, %v1113
    %v1121 = vmul.f32 %v602, %v1113
    %v1122 = vmul.f32 %v603, %v1113
    %v1123 = vmul.f32 %v604, %v1113
    %v1124 = vmul.f32 %v605, %v1113
    %v1125 = vmul.f32 %v606, %v1113
    %v1126 = vmul.f32 %v607, %v1113
    %v1127 = vmul.f32 %v608, %v1113
    %v1128 = vmul.f32 %v609, %v1113
    %v1129 = vmul.f32 %v610, %v1113
    %v1130 = vmul.f32 %v611, %v1113
    %v1131 = vmul.f32 %v612, %v1113
    %v1132 = vmul.f32 %v613, %v1113
    %v1133 = vmul.f32 %v614, %v1113
    %v1134 = vmul.f32 %v615, %v1113
    %v1135 = vmul.f32 %v616, %v1113
    %v1136 = vmul.f32 %v617, %v1113
    %v1137 = vmul.f32 %v618, %v1113
    %v1138 = vmul.f32 %v619, %v1113
    %v1139 = vmul.f32 %v620, %v1113
    %v1140 = vmul.f32 %v621, %v1113
    %v1141 = vmul.f32 %v622, %v1113
    %v1142 = vmul.f32 %v623, %v1113
    %v1143 = vmul.f32 %v624, %v1113
    %v1144 = vmul.f32 %v625, %v1113
    %v1145 = vmul.f32 %v626, %v1113
    %v1146 = vmul.f32 %v627, %v1113
    %v1147 = vmul.f32 %v628, %v1113
    %v1148 = vmul.f32 %v629, %v1113
    %v1149 = vmul.f32 %v630, %v1113
    %v1150 = vmul.f32 %v631, %v1113
    %v1151 = vmul.f32 %v632, %v1113
    %v1152 = vmul.f32 %v633, %v1113
    %v1153 = vmul.f32 %v634, %v1113
    %v1154 = vmul.f32 %v635, %v1113
    %v1155 = vmul.f32 %v636, %v1113
    %v1156 = vmul.f32 %v637, %v1113
    %v1157 = vmul.f32 %v638, %v1113
    %v1158 = vmul.f32 %v639, %v1113
    %v1159 = vmul.f32 %v640, %v1113
    %v1160 = vmul.f32 %v641, %v1113
    %v1161 = vmul.f32 %v642, %v1113
    %v1162 = vmul.f32 %v643, %v1113
    %v1163 = vmul.f32 %v644, %v1113
    %v1164 = vmul.f32 %v645, %v1113
    %v1165 = vmul.f32 %v646, %v1113
    %v1166 = vmul.f32 %v647, %v1113
    %v1167 = vmul.f32 %v648, %v1113
    %v1168 = vmul.f32 %v649, %v1113
    %v1169 = vmul.f32 %v650, %v1113
    %v1170 = vmul.f32 %v651, %v1113
    %v1171 = vmul.f32 %v652, %v1113
    %v1172 = vmul.f32 %v653, %v1113
    %v1173 = vmul.f32 %v654, %v1113
    %v1174 = vmul.f32 %v655, %v1113
    %v1175 = vmul.f32 %v656, %v1113
    %v1176 = vmul.f32 %v657, %v1113
    %v1177 = vmul.f32 %v658, %v1113
    %v1178 = vmul.f32 %v659, %v1113
    %1179 = vadd.xlane.f32.xlu0 %v1115
    %v1180 = vpop.xlane.xlu0 %1179
    %1181 = vadd.xlane.f32.xlu0 %v1116
    %v1182 = vpop.xlane.xlu0 %1181
    %1183 = vadd.xlane.f32.xlu0 %v1117
    %v1184 = vpop.xlane.xlu0 %1183
    %1185 = vadd.xlane.f32.xlu0 %v1118
    %v1186 = vpop.xlane.xlu0 %1185
    %1187 = vadd.xlane.f32.xlu0 %v1119
    %v1188 = vpop.xlane.xlu0 %1187
    %1189 = vadd.xlane.f32.xlu0 %v1120
    %v1190 = vpop.xlane.xlu0 %1189
    %1191 = vadd.xlane.f32.xlu0 %v1121
    %v1192 = vpop.xlane.xlu0 %1191
    %1193 = vadd.xlane.f32.xlu0 %v1122
    %v1194 = vpop.xlane.xlu0 %1193
    %1195 = vadd.xlane.f32.xlu0 %v1123
    %v1196 = vpop.xlane.xlu0 %1195
    %1197 = vadd.xlane.f32.xlu0 %v1124
    %v1198 = vpop.xlane.xlu0 %1197
    %1199 = vadd.xlane.f32.xlu0 %v1125
    %v1200 = vpop.xlane.xlu0 %1199
    %1201 = vadd.xlane.f32.xlu0 %v1126
    %v1202 = vpop.xlane.xlu0 %1201
    %1203 = vadd.xlane.f32.xlu0 %v1127
    %v1204 = vpop.xlane.xlu0 %1203
    %1205 = vadd.xlane.f32.xlu0 %v1128
    %v1206 = vpop.xlane.xlu0 %1205
    %1207 = vadd.xlane.f32.xlu0 %v1129
    %v1208 = vpop.xlane.xlu0 %1207
    %1209 = vadd.xlane.f32.xlu0 %v1130
    %v1210 = vpop.xlane.xlu0 %1209
    %1211 = vadd.xlane.f32.xlu0 %v1131
    %v1212 = vpop.xlane.xlu0 %1211
    %1213 = vadd.xlane.f32.xlu0 %v1132
    %v1214 = vpop.xlane.xlu0 %1213
    %1215 = vadd.xlane.f32.xlu0 %v1133
    %v1216 = vpop.xlane.xlu0 %1215
    %1217 = vadd.xlane.f32.xlu0 %v1134
    %v1218 = vpop.xlane.xlu0 %1217
    %1219 = vadd.xlane.f32.xlu0 %v1135
    %v1220 = vpop.xlane.xlu0 %1219
    %1221 = vadd.xlane.f32.xlu0 %v1136
    %v1222 = vpop.xlane.xlu0 %1221
    %1223 = vadd.xlane.f32.xlu0 %v1137
    %v1224 = vpop.xlane.xlu0 %1223
    %1225 = vadd.xlane.f32.xlu0 %v1138
    %v1226 = vpop.xlane.xlu0 %1225
    %1227 = vadd.xlane.f32.xlu0 %v1139
    %v1228 = vpop.xlane.xlu0 %1227
    %1229 = vadd.xlane.f32.xlu0 %v1140
    %v1230 = vpop.xlane.xlu0 %1229
    %1231 = vadd.xlane.f32.xlu0 %v1141
    %v1232 = vpop.xlane.xlu0 %1231
    %1233 = vadd.xlane.f32.xlu0 %v1142
    %v1234 = vpop.xlane.xlu0 %1233
    %1235 = vadd.xlane.f32.xlu0 %v1143
    %v1236 = vpop.xlane.xlu0 %1235
    %1237 = vadd.xlane.f32.xlu0 %v1144
    %v1238 = vpop.xlane.xlu0 %1237
    %1239 = vadd.xlane.f32.xlu0 %v1145
    %v1240 = vpop.xlane.xlu0 %1239
    %1241 = vadd.xlane.f32.xlu0 %v1146
    %v1242 = vpop.xlane.xlu0 %1241
    %1243 = vadd.xlane.f32.xlu0 %v1147
    %v1244 = vpop.xlane.xlu0 %1243
    %1245 = vadd.xlane.f32.xlu0 %v1148
    %v1246 = vpop.xlane.xlu0 %1245
    %1247 = vadd.xlane.f32.xlu0 %v1149
    %v1248 = vpop.xlane.xlu0 %1247
    %1249 = vadd.xlane.f32.xlu0 %v1150
    %v1250 = vpop.xlane.xlu0 %1249
    %1251 = vadd.xlane.f32.xlu0 %v1151
    %v1252 = vpop.xlane.xlu0 %1251
    %1253 = vadd.xlane.f32.xlu0 %v1152
    %v1254 = vpop.xlane.xlu0 %1253
    %1255 = vadd.xlane.f32.xlu0 %v1153
    %v1256 = vpop.xlane.xlu0 %1255
    %1257 = vadd.xlane.f32.xlu0 %v1154
    %v1258 = vpop.xlane.xlu0 %1257
    %1259 = vadd.xlane.f32.xlu0 %v1155
    %v1260 = vpop.xlane.xlu0 %1259
    %1261 = vadd.xlane.f32.xlu0 %v1156
    %v1262 = vpop.xlane.xlu0 %1261
    %1263 = vadd.xlane.f32.xlu0 %v1157
    %v1264 = vpop.xlane.xlu0 %1263
    %1265 = vadd.xlane.f32.xlu0 %v1158
    %v1266 = vpop.xlane.xlu0 %1265
    %1267 = vadd.xlane.f32.xlu0 %v1159
    %v1268 = vpop.xlane.xlu0 %1267
    %1269 = vadd.xlane.f32.xlu0 %v1160
    %v1270 = vpop.xlane.xlu0 %1269
    %1271 = vadd.xlane.f32.xlu0 %v1161
    %v1272 = vpop.xlane.xlu0 %1271
    %1273 = vadd.xlane.f32.xlu0 %v1162
    %v1274 = vpop.xlane.xlu0 %1273
    %1275 = vadd.xlane.f32.xlu0 %v1163
    %v1276 = vpop.xlane.xlu0 %1275
    %1277 = vadd.xlane.f32.xlu0 %v1164
    %v1278 = vpop.xlane.xlu0 %1277
    %1279 = vadd.xlane.f32.xlu0 %v1165
    %v1280 = vpop.xlane.xlu0 %1279
    %1281 = vadd.xlane.f32.xlu0 %v1166
    %v1282 = vpop.xlane.xlu0 %1281
    %1283 = vadd.xlane.f32.xlu0 %v1167
    %v1284 = vpop.xlane.xlu0 %1283
    %1285 = vadd.xlane.f32.xlu0 %v1168
    %v1286 = vpop.xlane.xlu0 %1285
    %1287 = vadd.xlane.f32.xlu0 %v1169
    %v1288 = vpop.xlane.xlu0 %1287
    %1289 = vadd.xlane.f32.xlu0 %v1170
    %v1290 = vpop.xlane.xlu0 %1289
    %1291 = vadd.xlane.f32.xlu0 %v1171
    %v1292 = vpop.xlane.xlu0 %1291
    %1293 = vadd.xlane.f32.xlu0 %v1172
    %v1294 = vpop.xlane.xlu0 %1293
    %1295 = vadd.xlane.f32.xlu0 %v1173
    %v1296 = vpop.xlane.xlu0 %1295
    %1297 = vadd.xlane.f32.xlu0 %v1174
    %v1298 = vpop.xlane.xlu0 %1297
    %1299 = vadd.xlane.f32.xlu0 %v1175
    %v1300 = vpop.xlane.xlu0 %1299
    %1301 = vadd.xlane.f32.xlu0 %v1176
    %v1302 = vpop.xlane.xlu0 %1301
    %1303 = vadd.xlane.f32.xlu0 %v1177
    %v1304 = vpop.xlane.xlu0 %1303
    %1305 = vadd.xlane.f32.xlu0 %v1178
    %v1306 = vpop.xlane.xlu0 %1305
    %v1308 = vlaneseq
    %v1309 = vshrl.u32 %v1308, 7
    %v1310 = vsub.s32 0, %v1309
    %v1311 = vrot.slane %v210, %v1310
    %v1313 = vmul.f32 %v1045, %v1311
    %v1314 = vmul.f32 %v1046, %v1311
    %v1315 = vmul.f32 %v1047, %v1311
    %v1316 = vmul.f32 %v1048, %v1311
    %v1317 = vmul.f32 %v1049, %v1311
    %v1318 = vmul.f32 %v1050, %v1311
    %v1319 = vmul.f32 %v1051, %v1311
    %v1320 = vmul.f32 %v1052, %v1311
    %v1321 = vmul.f32 %v1053, %v1311
    %v1322 = vmul.f32 %v1054, %v1311
    %v1323 = vmul.f32 %v1055, %v1311
    %v1324 = vmul.f32 %v1056, %v1311
    %v1325 = vmul.f32 %v1057, %v1311
    %v1326 = vmul.f32 %v1058, %v1311
    %v1327 = vmul.f32 %v1059, %v1311
    %v1328 = vmul.f32 %v1060, %v1311
    %v1329 = vmul.f32 %v1061, %v1311
    %v1330 = vmul.f32 %v1062, %v1311
    %v1331 = vmul.f32 %v1063, %v1311
    %v1332 = vmul.f32 %v1064, %v1311
    %v1333 = vmul.f32 %v1065, %v1311
    %v1334 = vmul.f32 %v1066, %v1311
    %v1335 = vmul.f32 %v1067, %v1311
    %v1336 = vmul.f32 %v1068, %v1311
    %v1337 = vmul.f32 %v1069, %v1311
    %v1338 = vmul.f32 %v1070, %v1311
    %v1339 = vmul.f32 %v1071, %v1311
    %v1340 = vmul.f32 %v1072, %v1311
    %v1341 = vmul.f32 %v1073, %v1311
    %v1342 = vmul.f32 %v1074, %v1311
    %v1343 = vmul.f32 %v1075, %v1311
    %v1344 = vmul.f32 %v1076, %v1311
    %v1345 = vmul.f32 %v1077, %v1311
    %v1346 = vmul.f32 %v1078, %v1311
    %v1347 = vmul.f32 %v1079, %v1311
    %v1348 = vmul.f32 %v1080, %v1311
    %v1349 = vmul.f32 %v1081, %v1311
    %v1350 = vmul.f32 %v1082, %v1311
    %v1351 = vmul.f32 %v1083, %v1311
    %v1352 = vmul.f32 %v1084, %v1311
    %v1353 = vmul.f32 %v1085, %v1311
    %v1354 = vmul.f32 %v1086, %v1311
    %v1355 = vmul.f32 %v1087, %v1311
    %v1356 = vmul.f32 %v1088, %v1311
    %v1357 = vmul.f32 %v1089, %v1311
    %v1358 = vmul.f32 %v1090, %v1311
    %v1359 = vmul.f32 %v1091, %v1311
    %v1360 = vmul.f32 %v1092, %v1311
    %v1361 = vmul.f32 %v1093, %v1311
    %v1362 = vmul.f32 %v1094, %v1311
    %v1363 = vmul.f32 %v1095, %v1311
    %v1364 = vmul.f32 %v1096, %v1311
    %v1365 = vmul.f32 %v1097, %v1311
    %v1366 = vmul.f32 %v1098, %v1311
    %v1367 = vmul.f32 %v1099, %v1311
    %v1368 = vmul.f32 %v1100, %v1311
    %v1369 = vmul.f32 %v1101, %v1311
    %v1370 = vmul.f32 %v1102, %v1311
    %v1371 = vmul.f32 %v1103, %v1311
    %v1372 = vmul.f32 %v1104, %v1311
    %v1373 = vmul.f32 %v1105, %v1311
    %v1374 = vmul.f32 %v1106, %v1311
    %v1375 = vmul.f32 %v1107, %v1311
    %v1376 = vmul.f32 %v1108, %v1311
    %1377 = vadd.xlane.f32.xlu0 %v1313
    %v1378 = vpop.xlane.xlu0 %1377
    %1379 = vadd.xlane.f32.xlu0 %v1314
    %v1380 = vpop.xlane.xlu0 %1379
    %1381 = vadd.xlane.f32.xlu0 %v1315
    %v1382 = vpop.xlane.xlu0 %1381
    %1383 = vadd.xlane.f32.xlu0 %v1316
    %v1384 = vpop.xlane.xlu0 %1383
    %1385 = vadd.xlane.f32.xlu0 %v1317
    %v1386 = vpop.xlane.xlu0 %1385
    %1387 = vadd.xlane.f32.xlu0 %v1318
    %v1388 = vpop.xlane.xlu0 %1387
    %1389 = vadd.xlane.f32.xlu0 %v1319
    %v1390 = vpop.xlane.xlu0 %1389
    %1391 = vadd.xlane.f32.xlu0 %v1320
    %v1392 = vpop.xlane.xlu0 %1391
    %1393 = vadd.xlane.f32.xlu0 %v1321
    %v1394 = vpop.xlane.xlu0 %1393
    %1395 = vadd.xlane.f32.xlu0 %v1322
    %v1396 = vpop.xlane.xlu0 %1395
    %1397 = vadd.xlane.f32.xlu0 %v1323
    %v1398 = vpop.xlane.xlu0 %1397
    %1399 = vadd.xlane.f32.xlu0 %v1324
    %v1400 = vpop.xlane.xlu0 %1399
    %1401 = vadd.xlane.f32.xlu0 %v1325
    %v1402 = vpop.xlane.xlu0 %1401
    %1403 = vadd.xlane.f32.xlu0 %v1326
    %v1404 = vpop.xlane.xlu0 %1403
    %1405 = vadd.xlane.f32.xlu0 %v1327
    %v1406 = vpop.xlane.xlu0 %1405
    %1407 = vadd.xlane.f32.xlu0 %v1328
    %v1408 = vpop.xlane.xlu0 %1407
    %1409 = vadd.xlane.f32.xlu0 %v1329
    %v1410 = vpop.xlane.xlu0 %1409
    %1411 = vadd.xlane.f32.xlu0 %v1330
    %v1412 = vpop.xlane.xlu0 %1411
    %1413 = vadd.xlane.f32.xlu0 %v1331
    %v1414 = vpop.xlane.xlu0 %1413
    %1415 = vadd.xlane.f32.xlu0 %v1332
    %v1416 = vpop.xlane.xlu0 %1415
    %1417 = vadd.xlane.f32.xlu0 %v1333
    %v1418 = vpop.xlane.xlu0 %1417
    %1419 = vadd.xlane.f32.xlu0 %v1334
    %v1420 = vpop.xlane.xlu0 %1419
    %1421 = vadd.xlane.f32.xlu0 %v1335
    %v1422 = vpop.xlane.xlu0 %1421
    %1423 = vadd.xlane.f32.xlu0 %v1336
    %v1424 = vpop.xlane.xlu0 %1423
    %1425 = vadd.xlane.f32.xlu0 %v1337
    %v1426 = vpop.xlane.xlu0 %1425
    %1427 = vadd.xlane.f32.xlu0 %v1338
    %v1428 = vpop.xlane.xlu0 %1427
    %1429 = vadd.xlane.f32.xlu0 %v1339
    %v1430 = vpop.xlane.xlu0 %1429
    %1431 = vadd.xlane.f32.xlu0 %v1340
    %v1432 = vpop.xlane.xlu0 %1431
    %1433 = vadd.xlane.f32.xlu0 %v1341
    %v1434 = vpop.xlane.xlu0 %1433
    %1435 = vadd.xlane.f32.xlu0 %v1342
    %v1436 = vpop.xlane.xlu0 %1435
    %1437 = vadd.xlane.f32.xlu0 %v1343
    %v1438 = vpop.xlane.xlu0 %1437
    %1439 = vadd.xlane.f32.xlu0 %v1344
    %v1440 = vpop.xlane.xlu0 %1439
    %1441 = vadd.xlane.f32.xlu0 %v1345
    %v1442 = vpop.xlane.xlu0 %1441
    %1443 = vadd.xlane.f32.xlu0 %v1346
    %v1444 = vpop.xlane.xlu0 %1443
    %1445 = vadd.xlane.f32.xlu0 %v1347
    %v1446 = vpop.xlane.xlu0 %1445
    %1447 = vadd.xlane.f32.xlu0 %v1348
    %v1448 = vpop.xlane.xlu0 %1447
    %1449 = vadd.xlane.f32.xlu0 %v1349
    %v1450 = vpop.xlane.xlu0 %1449
    %1451 = vadd.xlane.f32.xlu0 %v1350
    %v1452 = vpop.xlane.xlu0 %1451
    %1453 = vadd.xlane.f32.xlu0 %v1351
    %v1454 = vpop.xlane.xlu0 %1453
    %1455 = vadd.xlane.f32.xlu0 %v1352
    %v1456 = vpop.xlane.xlu0 %1455
    %1457 = vadd.xlane.f32.xlu0 %v1353
    %v1458 = vpop.xlane.xlu0 %1457
    %1459 = vadd.xlane.f32.xlu0 %v1354
    %v1460 = vpop.xlane.xlu0 %1459
    %1461 = vadd.xlane.f32.xlu0 %v1355
    %v1462 = vpop.xlane.xlu0 %1461
    %1463 = vadd.xlane.f32.xlu0 %v1356
    %v1464 = vpop.xlane.xlu0 %1463
    %1465 = vadd.xlane.f32.xlu0 %v1357
    %v1466 = vpop.xlane.xlu0 %1465
    %1467 = vadd.xlane.f32.xlu0 %v1358
    %v1468 = vpop.xlane.xlu0 %1467
    %1469 = vadd.xlane.f32.xlu0 %v1359
    %v1470 = vpop.xlane.xlu0 %1469
    %1471 = vadd.xlane.f32.xlu0 %v1360
    %v1472 = vpop.xlane.xlu0 %1471
    %1473 = vadd.xlane.f32.xlu0 %v1361
    %v1474 = vpop.xlane.xlu0 %1473
    %1475 = vadd.xlane.f32.xlu0 %v1362
    %v1476 = vpop.xlane.xlu0 %1475
    %1477 = vadd.xlane.f32.xlu0 %v1363
    %v1478 = vpop.xlane.xlu0 %1477
    %1479 = vadd.xlane.f32.xlu0 %v1364
    %v1480 = vpop.xlane.xlu0 %1479
    %1481 = vadd.xlane.f32.xlu0 %v1365
    %v1482 = vpop.xlane.xlu0 %1481
    %1483 = vadd.xlane.f32.xlu0 %v1366
    %v1484 = vpop.xlane.xlu0 %1483
    %1485 = vadd.xlane.f32.xlu0 %v1367
    %v1486 = vpop.xlane.xlu0 %1485
    %1487 = vadd.xlane.f32.xlu0 %v1368
    %v1488 = vpop.xlane.xlu0 %1487
    %1489 = vadd.xlane.f32.xlu0 %v1369
    %v1490 = vpop.xlane.xlu0 %1489
    %1491 = vadd.xlane.f32.xlu0 %v1370
    %v1492 = vpop.xlane.xlu0 %1491
    %1493 = vadd.xlane.f32.xlu0 %v1371
    %v1494 = vpop.xlane.xlu0 %1493
    %1495 = vadd.xlane.f32.xlu0 %v1372
    %v1496 = vpop.xlane.xlu0 %1495
    %1497 = vadd.xlane.f32.xlu0 %v1373
    %v1498 = vpop.xlane.xlu0 %1497
    %1499 = vadd.xlane.f32.xlu0 %v1374
    %v1500 = vpop.xlane.xlu0 %1499
    %1501 = vadd.xlane.f32.xlu0 %v1375
    %v1502 = vpop.xlane.xlu0 %1501
    %1503 = vadd.xlane.f32.xlu0 %v1376
    %v1504 = vpop.xlane.xlu0 %1503
    %v1505 = vadd.f32 %v1180, %v1378
    %v1506 = vadd.f32 %v1182, %v1380
    %v1507 = vadd.f32 %v1184, %v1382
    %v1508 = vadd.f32 %v1186, %v1384
    %v1509 = vadd.f32 %v1188, %v1386
    %v1510 = vadd.f32 %v1190, %v1388
    %v1511 = vadd.f32 %v1192, %v1390
    %v1512 = vadd.f32 %v1194, %v1392
    %v1513 = vadd.f32 %v1196, %v1394
    %v1514 = vadd.f32 %v1198, %v1396
    %v1515 = vadd.f32 %v1200, %v1398
    %v1516 = vadd.f32 %v1202, %v1400
    %v1517 = vadd.f32 %v1204, %v1402
    %v1518 = vadd.f32 %v1206, %v1404
    %v1519 = vadd.f32 %v1208, %v1406
    %v1520 = vadd.f32 %v1210, %v1408
    %v1521 = vadd.f32 %v1212, %v1410
    %v1522 = vadd.f32 %v1214, %v1412
    %v1523 = vadd.f32 %v1216, %v1414
    %v1524 = vadd.f32 %v1218, %v1416
    %v1525 = vadd.f32 %v1220, %v1418
    %v1526 = vadd.f32 %v1222, %v1420
    %v1527 = vadd.f32 %v1224, %v1422
    %v1528 = vadd.f32 %v1226, %v1424
    %v1529 = vadd.f32 %v1228, %v1426
    %v1530 = vadd.f32 %v1230, %v1428
    %v1531 = vadd.f32 %v1232, %v1430
    %v1532 = vadd.f32 %v1234, %v1432
    %v1533 = vadd.f32 %v1236, %v1434
    %v1534 = vadd.f32 %v1238, %v1436
    %v1535 = vadd.f32 %v1240, %v1438
    %v1536 = vadd.f32 %v1242, %v1440
    %v1537 = vadd.f32 %v1244, %v1442
    %v1538 = vadd.f32 %v1246, %v1444
    %v1539 = vadd.f32 %v1248, %v1446
    %v1540 = vadd.f32 %v1250, %v1448
    %v1541 = vadd.f32 %v1252, %v1450
    %v1542 = vadd.f32 %v1254, %v1452
    %v1543 = vadd.f32 %v1256, %v1454
    %v1544 = vadd.f32 %v1258, %v1456
    %v1545 = vadd.f32 %v1260, %v1458
    %v1546 = vadd.f32 %v1262, %v1460
    %v1547 = vadd.f32 %v1264, %v1462
    %v1548 = vadd.f32 %v1266, %v1464
    %v1549 = vadd.f32 %v1268, %v1466
    %v1550 = vadd.f32 %v1270, %v1468
    %v1551 = vadd.f32 %v1272, %v1470
    %v1552 = vadd.f32 %v1274, %v1472
    %v1553 = vadd.f32 %v1276, %v1474
    %v1554 = vadd.f32 %v1278, %v1476
    %v1555 = vadd.f32 %v1280, %v1478
    %v1556 = vadd.f32 %v1282, %v1480
    %v1557 = vadd.f32 %v1284, %v1482
    %v1558 = vadd.f32 %v1286, %v1484
    %v1559 = vadd.f32 %v1288, %v1486
    %v1560 = vadd.f32 %v1290, %v1488
    %v1561 = vadd.f32 %v1292, %v1490
    %v1562 = vadd.f32 %v1294, %v1492
    %v1563 = vadd.f32 %v1296, %v1494
    %v1564 = vadd.f32 %v1298, %v1496
    %v1565 = vadd.f32 %v1300, %v1498
    %v1566 = vadd.f32 %v1302, %v1500
    %v1567 = vadd.f32 %v1304, %v1502
    %v1568 = vadd.f32 %v1306, %v1504
    %v1569 = vxor.u32 %v1505, 2147483648
    %v1570 = vxor.u32 %v1506, 2147483648
    %v1571 = vxor.u32 %v1507, 2147483648
    %v1572 = vxor.u32 %v1508, 2147483648
    %v1573 = vxor.u32 %v1509, 2147483648
    %v1574 = vxor.u32 %v1510, 2147483648
    %v1575 = vxor.u32 %v1511, 2147483648
    %v1576 = vxor.u32 %v1512, 2147483648
    %v1577 = vxor.u32 %v1513, 2147483648
    %v1578 = vxor.u32 %v1514, 2147483648
    %v1579 = vxor.u32 %v1515, 2147483648
    %v1580 = vxor.u32 %v1516, 2147483648
    %v1581 = vxor.u32 %v1517, 2147483648
    %v1582 = vxor.u32 %v1518, 2147483648
    %v1583 = vxor.u32 %v1519, 2147483648
    %v1584 = vxor.u32 %v1520, 2147483648
    %v1585 = vxor.u32 %v1521, 2147483648
    %v1586 = vxor.u32 %v1522, 2147483648
    %v1587 = vxor.u32 %v1523, 2147483648
    %v1588 = vxor.u32 %v1524, 2147483648
    %v1589 = vxor.u32 %v1525, 2147483648
    %v1590 = vxor.u32 %v1526, 2147483648
    %v1591 = vxor.u32 %v1527, 2147483648
    %v1592 = vxor.u32 %v1528, 2147483648
    %v1593 = vxor.u32 %v1529, 2147483648
    %v1594 = vxor.u32 %v1530, 2147483648
    %v1595 = vxor.u32 %v1531, 2147483648
    %v1596 = vxor.u32 %v1532, 2147483648
    %v1597 = vxor.u32 %v1533, 2147483648
    %v1598 = vxor.u32 %v1534, 2147483648
    %v1599 = vxor.u32 %v1535, 2147483648
    %v1600 = vxor.u32 %v1536, 2147483648
    %v1601 = vxor.u32 %v1537, 2147483648
    %v1602 = vxor.u32 %v1538, 2147483648
    %v1603 = vxor.u32 %v1539, 2147483648
    %v1604 = vxor.u32 %v1540, 2147483648
    %v1605 = vxor.u32 %v1541, 2147483648
    %v1606 = vxor.u32 %v1542, 2147483648
    %v1607 = vxor.u32 %v1543, 2147483648
    %v1608 = vxor.u32 %v1544, 2147483648
    %v1609 = vxor.u32 %v1545, 2147483648
    %v1610 = vxor.u32 %v1546, 2147483648
    %v1611 = vxor.u32 %v1547, 2147483648
    %v1612 = vxor.u32 %v1548, 2147483648
    %v1613 = vxor.u32 %v1549, 2147483648
    %v1614 = vxor.u32 %v1550, 2147483648
    %v1615 = vxor.u32 %v1551, 2147483648
    %v1616 = vxor.u32 %v1552, 2147483648
    %v1617 = vxor.u32 %v1553, 2147483648
    %v1618 = vxor.u32 %v1554, 2147483648
    %v1619 = vxor.u32 %v1555, 2147483648
    %v1620 = vxor.u32 %v1556, 2147483648
    %v1621 = vxor.u32 %v1557, 2147483648
    %v1622 = vxor.u32 %v1558, 2147483648
    %v1623 = vxor.u32 %v1559, 2147483648
    %v1624 = vxor.u32 %v1560, 2147483648
    %v1625 = vxor.u32 %v1561, 2147483648
    %v1626 = vxor.u32 %v1562, 2147483648
    %v1627 = vxor.u32 %v1563, 2147483648
    %v1628 = vxor.u32 %v1564, 2147483648
    %v1629 = vxor.u32 %v1565, 2147483648
    %v1630 = vxor.u32 %v1566, 2147483648
    %v1631 = vxor.u32 %v1567, 2147483648
    %v1632 = vxor.u32 %v1568, 2147483648
    %v1633 = vmul.f32 %v1569, 1.442695
    %v1634 = vpow.pop %v1633
    %v1635 = vmul.f32 %v1570, 1.442695
    %v1636 = vpow.pop %v1635
    %v1637 = vmul.f32 %v1571, 1.442695
    %v1638 = vpow.pop %v1637
    %v1639 = vmul.f32 %v1572, 1.442695
    %v1640 = vpow.pop %v1639
    %v1641 = vmul.f32 %v1573, 1.442695
    %v1642 = vpow.pop %v1641
    %v1643 = vmul.f32 %v1574, 1.442695
    %v1644 = vpow.pop %v1643
    %v1645 = vmul.f32 %v1575, 1.442695
    %v1646 = vpow.pop %v1645
    %v1647 = vmul.f32 %v1576, 1.442695
    %v1648 = vpow.pop %v1647
    %v1649 = vmul.f32 %v1577, 1.442695
    %v1650 = vpow.pop %v1649
    %v1651 = vmul.f32 %v1578, 1.442695
    %v1652 = vpow.pop %v1651
    %v1653 = vmul.f32 %v1579, 1.442695
    %v1654 = vpow.pop %v1653
    %v1655 = vmul.f32 %v1580, 1.442695
    %v1656 = vpow.pop %v1655
    %v1657 = vmul.f32 %v1581, 1.442695
    %v1658 = vpow.pop %v1657
    %v1659 = vmul.f32 %v1582, 1.442695
    %v1660 = vpow.pop %v1659
    %v1661 = vmul.f32 %v1583, 1.442695
    %v1662 = vpow.pop %v1661
    %v1663 = vmul.f32 %v1584, 1.442695
    %v1664 = vpow.pop %v1663
    %v1665 = vmul.f32 %v1585, 1.442695
    %v1666 = vpow.pop %v1665
    %v1667 = vmul.f32 %v1586, 1.442695
    %v1668 = vpow.pop %v1667
    %v1669 = vmul.f32 %v1587, 1.442695
    %v1670 = vpow.pop %v1669
    %v1671 = vmul.f32 %v1588, 1.442695
    %v1672 = vpow.pop %v1671
    %v1673 = vmul.f32 %v1589, 1.442695
    %v1674 = vpow.pop %v1673
    %v1675 = vmul.f32 %v1590, 1.442695
    %v1676 = vpow.pop %v1675
    %v1677 = vmul.f32 %v1591, 1.442695
    %v1678 = vpow.pop %v1677
    %v1679 = vmul.f32 %v1592, 1.442695
    %v1680 = vpow.pop %v1679
    %v1681 = vmul.f32 %v1593, 1.442695
    %v1682 = vpow.pop %v1681
    %v1683 = vmul.f32 %v1594, 1.442695
    %v1684 = vpow.pop %v1683
    %v1685 = vmul.f32 %v1595, 1.442695
    %v1686 = vpow.pop %v1685
    %v1687 = vmul.f32 %v1596, 1.442695
    %v1688 = vpow.pop %v1687
    %v1689 = vmul.f32 %v1597, 1.442695
    %v1690 = vpow.pop %v1689
    %v1691 = vmul.f32 %v1598, 1.442695
    %v1692 = vpow.pop %v1691
    %v1693 = vmul.f32 %v1599, 1.442695
    %v1694 = vpow.pop %v1693
    %v1695 = vmul.f32 %v1600, 1.442695
    %v1696 = vpow.pop %v1695
    %v1697 = vmul.f32 %v1601, 1.442695
    %v1698 = vpow.pop %v1697
    %v1699 = vmul.f32 %v1602, 1.442695
    %v1700 = vpow.pop %v1699
    %v1701 = vmul.f32 %v1603, 1.442695
    %v1702 = vpow.pop %v1701
    %v1703 = vmul.f32 %v1604, 1.442695
    %v1704 = vpow.pop %v1703
    %v1705 = vmul.f32 %v1605, 1.442695
    %v1706 = vpow.pop %v1705
    %v1707 = vmul.f32 %v1606, 1.442695
    %v1708 = vpow.pop %v1707
    %v1709 = vmul.f32 %v1607, 1.442695
    %v1710 = vpow.pop %v1709
    %v1711 = vmul.f32 %v1608, 1.442695
    %v1712 = vpow.pop %v1711
    %v1713 = vmul.f32 %v1609, 1.442695
    %v1714 = vpow.pop %v1713
    %v1715 = vmul.f32 %v1610, 1.442695
    %v1716 = vpow.pop %v1715
    %v1717 = vmul.f32 %v1611, 1.442695
    %v1718 = vpow.pop %v1717
    %v1719 = vmul.f32 %v1612, 1.442695
    %v1720 = vpow.pop %v1719
    %v1721 = vmul.f32 %v1613, 1.442695
    %v1722 = vpow.pop %v1721
    %v1723 = vmul.f32 %v1614, 1.442695
    %v1724 = vpow.pop %v1723
    %v1725 = vmul.f32 %v1615, 1.442695
    %v1726 = vpow.pop %v1725
    %v1727 = vmul.f32 %v1616, 1.442695
    %v1728 = vpow.pop %v1727
    %v1729 = vmul.f32 %v1617, 1.442695
    %v1730 = vpow.pop %v1729
    %v1731 = vmul.f32 %v1618, 1.442695
    %v1732 = vpow.pop %v1731
    %v1733 = vmul.f32 %v1619, 1.442695
    %v1734 = vpow.pop %v1733
    %v1735 = vmul.f32 %v1620, 1.442695
    %v1736 = vpow.pop %v1735
    %v1737 = vmul.f32 %v1621, 1.442695
    %v1738 = vpow.pop %v1737
    %v1739 = vmul.f32 %v1622, 1.442695
    %v1740 = vpow.pop %v1739
    %v1741 = vmul.f32 %v1623, 1.442695
    %v1742 = vpow.pop %v1741
    %v1743 = vmul.f32 %v1624, 1.442695
    %v1744 = vpow.pop %v1743
    %v1745 = vmul.f32 %v1625, 1.442695
    %v1746 = vpow.pop %v1745
    %v1747 = vmul.f32 %v1626, 1.442695
    %v1748 = vpow.pop %v1747
    %v1749 = vmul.f32 %v1627, 1.442695
    %v1750 = vpow.pop %v1749
    %v1751 = vmul.f32 %v1628, 1.442695
    %v1752 = vpow.pop %v1751
    %v1753 = vmul.f32 %v1629, 1.442695
    %v1754 = vpow.pop %v1753
    %v1755 = vmul.f32 %v1630, 1.442695
    %v1756 = vpow.pop %v1755
    %v1757 = vmul.f32 %v1631, 1.442695
    %v1758 = vpow.pop %v1757
    %v1759 = vmul.f32 %v1632, 1.442695
    %v1760 = vpow.pop %v1759
    %v1761 = vadd.f32 %v1634, 1.0
    %v1762 = vadd.f32 %v1636, 1.0
    %v1763 = vadd.f32 %v1638, 1.0
    %v1764 = vadd.f32 %v1640, 1.0
    %v1765 = vadd.f32 %v1642, 1.0
    %v1766 = vadd.f32 %v1644, 1.0
    %v1767 = vadd.f32 %v1646, 1.0
    %v1768 = vadd.f32 %v1648, 1.0
    %v1769 = vadd.f32 %v1650, 1.0
    %v1770 = vadd.f32 %v1652, 1.0
    %v1771 = vadd.f32 %v1654, 1.0
    %v1772 = vadd.f32 %v1656, 1.0
    %v1773 = vadd.f32 %v1658, 1.0
    %v1774 = vadd.f32 %v1660, 1.0
    %v1775 = vadd.f32 %v1662, 1.0
    %v1776 = vadd.f32 %v1664, 1.0
    %v1777 = vadd.f32 %v1666, 1.0
    %v1778 = vadd.f32 %v1668, 1.0
    %v1779 = vadd.f32 %v1670, 1.0
    %v1780 = vadd.f32 %v1672, 1.0
    %v1781 = vadd.f32 %v1674, 1.0
    %v1782 = vadd.f32 %v1676, 1.0
    %v1783 = vadd.f32 %v1678, 1.0
    %v1784 = vadd.f32 %v1680, 1.0
    %v1785 = vadd.f32 %v1682, 1.0
    %v1786 = vadd.f32 %v1684, 1.0
    %v1787 = vadd.f32 %v1686, 1.0
    %v1788 = vadd.f32 %v1688, 1.0
    %v1789 = vadd.f32 %v1690, 1.0
    %v1790 = vadd.f32 %v1692, 1.0
    %v1791 = vadd.f32 %v1694, 1.0
    %v1792 = vadd.f32 %v1696, 1.0
    %v1793 = vadd.f32 %v1698, 1.0
    %v1794 = vadd.f32 %v1700, 1.0
    %v1795 = vadd.f32 %v1702, 1.0
    %v1796 = vadd.f32 %v1704, 1.0
    %v1797 = vadd.f32 %v1706, 1.0
    %v1798 = vadd.f32 %v1708, 1.0
    %v1799 = vadd.f32 %v1710, 1.0
    %v1800 = vadd.f32 %v1712, 1.0
    %v1801 = vadd.f32 %v1714, 1.0
    %v1802 = vadd.f32 %v1716, 1.0
    %v1803 = vadd.f32 %v1718, 1.0
    %v1804 = vadd.f32 %v1720, 1.0
    %v1805 = vadd.f32 %v1722, 1.0
    %v1806 = vadd.f32 %v1724, 1.0
    %v1807 = vadd.f32 %v1726, 1.0
    %v1808 = vadd.f32 %v1728, 1.0
    %v1809 = vadd.f32 %v1730, 1.0
    %v1810 = vadd.f32 %v1732, 1.0
    %v1811 = vadd.f32 %v1734, 1.0
    %v1812 = vadd.f32 %v1736, 1.0
    %v1813 = vadd.f32 %v1738, 1.0
    %v1814 = vadd.f32 %v1740, 1.0
    %v1815 = vadd.f32 %v1742, 1.0
    %v1816 = vadd.f32 %v1744, 1.0
    %v1817 = vadd.f32 %v1746, 1.0
    %v1818 = vadd.f32 %v1748, 1.0
    %v1819 = vadd.f32 %v1750, 1.0
    %v1820 = vadd.f32 %v1752, 1.0
    %v1821 = vadd.f32 %v1754, 1.0
    %v1822 = vadd.f32 %v1756, 1.0
    %v1823 = vadd.f32 %v1758, 1.0
    %v1824 = vadd.f32 %v1760, 1.0
    %v1825 = vrcp.pop %v1761
    %v1826 = vmul.f32 1.0, %v1825
    %v1827 = vrcp.pop %v1762
    %v1828 = vmul.f32 1.0, %v1827
    %v1829 = vrcp.pop %v1763
    %v1830 = vmul.f32 1.0, %v1829
    %v1831 = vrcp.pop %v1764
    %v1832 = vmul.f32 1.0, %v1831
    %v1833 = vrcp.pop %v1765
    %v1834 = vmul.f32 1.0, %v1833
    %v1835 = vrcp.pop %v1766
    %v1836 = vmul.f32 1.0, %v1835
    %v1837 = vrcp.pop %v1767
    %v1838 = vmul.f32 1.0, %v1837
    %v1839 = vrcp.pop %v1768
    %v1840 = vmul.f32 1.0, %v1839
    %v1841 = vrcp.pop %v1769
    %v1842 = vmul.f32 1.0, %v1841
    %v1843 = vrcp.pop %v1770
    %v1844 = vmul.f32 1.0, %v1843
    %v1845 = vrcp.pop %v1771
    %v1846 = vmul.f32 1.0, %v1845
    %v1847 = vrcp.pop %v1772
    %v1848 = vmul.f32 1.0, %v1847
    %v1849 = vrcp.pop %v1773
    %v1850 = vmul.f32 1.0, %v1849
    %v1851 = vrcp.pop %v1774
    %v1852 = vmul.f32 1.0, %v1851
    %v1853 = vrcp.pop %v1775
    %v1854 = vmul.f32 1.0, %v1853
    %v1855 = vrcp.pop %v1776
    %v1856 = vmul.f32 1.0, %v1855
    %v1857 = vrcp.pop %v1777
    %v1858 = vmul.f32 1.0, %v1857
    %v1859 = vrcp.pop %v1778
    %v1860 = vmul.f32 1.0, %v1859
    %v1861 = vrcp.pop %v1779
    %v1862 = vmul.f32 1.0, %v1861
    %v1863 = vrcp.pop %v1780
    %v1864 = vmul.f32 1.0, %v1863
    %v1865 = vrcp.pop %v1781
    %v1866 = vmul.f32 1.0, %v1865
    %v1867 = vrcp.pop %v1782
    %v1868 = vmul.f32 1.0, %v1867
    %v1869 = vrcp.pop %v1783
    %v1870 = vmul.f32 1.0, %v1869
    %v1871 = vrcp.pop %v1784
    %v1872 = vmul.f32 1.0, %v1871
    %v1873 = vrcp.pop %v1785
    %v1874 = vmul.f32 1.0, %v1873
    %v1875 = vrcp.pop %v1786
    %v1876 = vmul.f32 1.0, %v1875
    %v1877 = vrcp.pop %v1787
    %v1878 = vmul.f32 1.0, %v1877
    %v1879 = vrcp.pop %v1788
    %v1880 = vmul.f32 1.0, %v1879
    %v1881 = vrcp.pop %v1789
    %v1882 = vmul.f32 1.0, %v1881
    %v1883 = vrcp.pop %v1790
    %v1884 = vmul.f32 1.0, %v1883
    %v1885 = vrcp.pop %v1791
    %v1886 = vmul.f32 1.0, %v1885
    %v1887 = vrcp.pop %v1792
    %v1888 = vmul.f32 1.0, %v1887
    %v1889 = vrcp.pop %v1793
    %v1890 = vmul.f32 1.0, %v1889
    %v1891 = vrcp.pop %v1794
    %v1892 = vmul.f32 1.0, %v1891
    %v1893 = vrcp.pop %v1795
    %v1894 = vmul.f32 1.0, %v1893
    %v1895 = vrcp.pop %v1796
    %v1896 = vmul.f32 1.0, %v1895
    %v1897 = vrcp.pop %v1797
    %v1898 = vmul.f32 1.0, %v1897
    %v1899 = vrcp.pop %v1798
    %v1900 = vmul.f32 1.0, %v1899
    %v1901 = vrcp.pop %v1799
    %v1902 = vmul.f32 1.0, %v1901
    %v1903 = vrcp.pop %v1800
    %v1904 = vmul.f32 1.0, %v1903
    %v1905 = vrcp.pop %v1801
    %v1906 = vmul.f32 1.0, %v1905
    %v1907 = vrcp.pop %v1802
    %v1908 = vmul.f32 1.0, %v1907
    %v1909 = vrcp.pop %v1803
    %v1910 = vmul.f32 1.0, %v1909
    %v1911 = vrcp.pop %v1804
    %v1912 = vmul.f32 1.0, %v1911
    %v1913 = vrcp.pop %v1805
    %v1914 = vmul.f32 1.0, %v1913
    %v1915 = vrcp.pop %v1806
    %v1916 = vmul.f32 1.0, %v1915
    %v1917 = vrcp.pop %v1807
    %v1918 = vmul.f32 1.0, %v1917
    %v1919 = vrcp.pop %v1808
    %v1920 = vmul.f32 1.0, %v1919
    %v1921 = vrcp.pop %v1809
    %v1922 = vmul.f32 1.0, %v1921
    %v1923 = vrcp.pop %v1810
    %v1924 = vmul.f32 1.0, %v1923
    %v1925 = vrcp.pop %v1811
    %v1926 = vmul.f32 1.0, %v1925
    %v1927 = vrcp.pop %v1812
    %v1928 = vmul.f32 1.0, %v1927
    %v1929 = vrcp.pop %v1813
    %v1930 = vmul.f32 1.0, %v1929
    %v1931 = vrcp.pop %v1814
    %v1932 = vmul.f32 1.0, %v1931
    %v1933 = vrcp.pop %v1815
    %v1934 = vmul.f32 1.0, %v1933
    %v1935 = vrcp.pop %v1816
    %v1936 = vmul.f32 1.0, %v1935
    %v1937 = vrcp.pop %v1817
    %v1938 = vmul.f32 1.0, %v1937
    %v1939 = vrcp.pop %v1818
    %v1940 = vmul.f32 1.0, %v1939
    %v1941 = vrcp.pop %v1819
    %v1942 = vmul.f32 1.0, %v1941
    %v1943 = vrcp.pop %v1820
    %v1944 = vmul.f32 1.0, %v1943
    %v1945 = vrcp.pop %v1821
    %v1946 = vmul.f32 1.0, %v1945
    %v1947 = vrcp.pop %v1822
    %v1948 = vmul.f32 1.0, %v1947
    %v1949 = vrcp.pop %v1823
    %v1950 = vmul.f32 1.0, %v1949
    %v1951 = vrcp.pop %v1824
    %v1952 = vmul.f32 1.0, %v1951
    %1953 = vmatprep.subr.mxu0 0.0
    %1954 = vmatpush1.xpose.msra.mxu0 %v1045
    %1955 = vmatprep.subr.mxu0 0.0
    %1956 = vmatpush1.xpose.msra.mxu0 %v1046
    %1957 = vmatprep.subr.mxu0 0.0
    %1958 = vmatpush1.xpose.msra.mxu0 %v1047
    %1959 = vmatprep.subr.mxu0 0.0
    %1960 = vmatpush1.xpose.msra.mxu0 %v1048
    %1961 = vmatprep.subr.mxu0 0.0
    %1962 = vmatpush1.xpose.msra.mxu0 %v1049
    %1963 = vmatprep.subr.mxu0 0.0
    %1964 = vmatpush1.xpose.msra.mxu0 %v1050
    %1965 = vmatprep.subr.mxu0 0.0
    %1966 = vmatpush1.xpose.msra.mxu0 %v1051
    %1967 = vmatprep.subr.mxu0 0.0
    %1968 = vmatpush1.xpose.msra.mxu0 %v1052
    %1969 = vmatprep.subr.mxu0 0.0
    %1970 = vmatpush1.xpose.msra.mxu0 %v1053
    %1971 = vmatprep.subr.mxu0 0.0
    %1972 = vmatpush1.xpose.msra.mxu0 %v1054
    %1973 = vmatprep.subr.mxu0 0.0
    %1974 = vmatpush1.xpose.msra.mxu0 %v1055
    %1975 = vmatprep.subr.mxu0 0.0
    %1976 = vmatpush1.xpose.msra.mxu0 %v1056
    %1977 = vmatprep.subr.mxu0 0.0
    %1978 = vmatpush1.xpose.msra.mxu0 %v1057
    %1979 = vmatprep.subr.mxu0 0.0
    %1980 = vmatpush1.xpose.msra.mxu0 %v1058
    %1981 = vmatprep.subr.mxu0 0.0
    %1982 = vmatpush1.xpose.msra.mxu0 %v1059
    %1983 = vmatprep.subr.mxu0 0.0
    %1984 = vmatpush1.xpose.msra.mxu0 %v1060
    %1985 = vmatprep.subr.mxu0 0.0
    %1986 = vmatpush1.xpose.msra.mxu0 %v1061
    %1987 = vmatprep.subr.mxu0 0.0
    %1988 = vmatpush1.xpose.msra.mxu0 %v1062
    %1989 = vmatprep.subr.mxu0 0.0
    %1990 = vmatpush1.xpose.msra.mxu0 %v1063
    %1991 = vmatprep.subr.mxu0 0.0
    %1992 = vmatpush1.xpose.msra.mxu0 %v1064
    %1993 = vmatprep.subr.mxu0 0.0
    %1994 = vmatpush1.xpose.msra.mxu0 %v1065
    %1995 = vmatprep.subr.mxu0 0.0
    %1996 = vmatpush1.xpose.msra.mxu0 %v1066
    %1997 = vmatprep.subr.mxu0 0.0
    %1998 = vmatpush1.xpose.msra.mxu0 %v1067
    %1999 = vmatprep.subr.mxu0 0.0
    %2000 = vmatpush1.xpose.msra.mxu0 %v1068
    %2001 = vmatprep.subr.mxu0 0.0
    %2002 = vmatpush1.xpose.msra.mxu0 %v1069
    %2003 = vmatprep.subr.mxu0 0.0
    %2004 = vmatpush1.xpose.msra.mxu0 %v1070
    %2005 = vmatprep.subr.mxu0 0.0
    %2006 = vmatpush1.xpose.msra.mxu0 %v1071
    %2007 = vmatprep.subr.mxu0 0.0
    %2008 = vmatpush1.xpose.msra.mxu0 %v1072
    %2009 = vmatprep.subr.mxu0 0.0
    %2010 = vmatpush1.xpose.msra.mxu0 %v1073
    %2011 = vmatprep.subr.mxu0 0.0
    %2012 = vmatpush1.xpose.msra.mxu0 %v1074
    %2013 = vmatprep.subr.mxu0 0.0
    %2014 = vmatpush1.xpose.msra.mxu0 %v1075
    %2015 = vmatprep.subr.mxu0 0.0
    %2016 = vmatpush1.xpose.msra.mxu0 %v1076
    %2017 = vmatprep.mubr.f32.mxu0 0.0
    %2018 = vmatmul.mubr.f32.gmra.mrb[0].mxu0 %v210
    %v2019 = vpop.f32.mrb[0].mxu0
    %v2020 = vadd.f32 0.0, %v2019
    %v2021 = vpop.f32.mrb[0].mxu0
    %v2022 = vadd.f32 0.0, %v2021
    %2023 = vdwg.mxu0
    %2024 = vmatprep.subr.mxu0 0.0
    %2025 = vmatpush1.xpose.msra.mxu0 %v1077
    %2026 = vmatprep.subr.mxu0 0.0
    %2027 = vmatpush1.xpose.msra.mxu0 %v1078
    %2028 = vmatprep.subr.mxu0 0.0
    %2029 = vmatpush1.xpose.msra.mxu0 %v1079
    %2030 = vmatprep.subr.mxu0 0.0
    %2031 = vmatpush1.xpose.msra.mxu0 %v1080
    %2032 = vmatprep.subr.mxu0 0.0
    %2033 = vmatpush1.xpose.msra.mxu0 %v1081
    %2034 = vmatprep.subr.mxu0 0.0
    %2035 = vmatpush1.xpose.msra.mxu0 %v1082
    %2036 = vmatprep.subr.mxu0 0.0
    %2037 = vmatpush1.xpose.msra.mxu0 %v1083
    %2038 = vmatprep.subr.mxu0 0.0
    %2039 = vmatpush1.xpose.msra.mxu0 %v1084
    %2040 = vmatprep.subr.mxu0 0.0
    %2041 = vmatpush1.xpose.msra.mxu0 %v1085
    %2042 = vmatprep.subr.mxu0 0.0
    %2043 = vmatpush1.xpose.msra.mxu0 %v1086
    %2044 = vmatprep.subr.mxu0 0.0
    %2045 = vmatpush1.xpose.msra.mxu0 %v1087
    %2046 = vmatprep.subr.mxu0 0.0
    %2047 = vmatpush1.xpose.msra.mxu0 %v1088
    %2048 = vmatprep.subr.mxu0 0.0
    %2049 = vmatpush1.xpose.msra.mxu0 %v1089
    %2050 = vmatprep.subr.mxu0 0.0
    %2051 = vmatpush1.xpose.msra.mxu0 %v1090
    %2052 = vmatprep.subr.mxu0 0.0
    %2053 = vmatpush1.xpose.msra.mxu0 %v1091
    %2054 = vmatprep.subr.mxu0 0.0
    %2055 = vmatpush1.xpose.msra.mxu0 %v1092
    %2056 = vmatprep.subr.mxu0 0.0
    %2057 = vmatpush1.xpose.msra.mxu0 %v1093
    %2058 = vmatprep.subr.mxu0 0.0
    %2059 = vmatpush1.xpose.msra.mxu0 %v1094
    %2060 = vmatprep.subr.mxu0 0.0
    %2061 = vmatpush1.xpose.msra.mxu0 %v1095
    %2062 = vmatprep.subr.mxu0 0.0
    %2063 = vmatpush1.xpose.msra.mxu0 %v1096
    %2064 = vmatprep.subr.mxu0 0.0
    %2065 = vmatpush1.xpose.msra.mxu0 %v1097
    %2066 = vmatprep.subr.mxu0 0.0
    %2067 = vmatpush1.xpose.msra.mxu0 %v1098
    %2068 = vmatprep.subr.mxu0 0.0
    %2069 = vmatpush1.xpose.msra.mxu0 %v1099
    %2070 = vmatprep.subr.mxu0 0.0
    %2071 = vmatpush1.xpose.msra.mxu0 %v1100
    %2072 = vmatprep.subr.mxu0 0.0
    %2073 = vmatpush1.xpose.msra.mxu0 %v1101
    %2074 = vmatprep.subr.mxu0 0.0
    %2075 = vmatpush1.xpose.msra.mxu0 %v1102
    %2076 = vmatprep.subr.mxu0 0.0
    %2077 = vmatpush1.xpose.msra.mxu0 %v1103
    %2078 = vmatprep.subr.mxu0 0.0
    %2079 = vmatpush1.xpose.msra.mxu0 %v1104
    %2080 = vmatprep.subr.mxu0 0.0
    %2081 = vmatpush1.xpose.msra.mxu0 %v1105
    %2082 = vmatprep.subr.mxu0 0.0
    %2083 = vmatpush1.xpose.msra.mxu0 %v1106
    %2084 = vmatprep.subr.mxu0 0.0
    %2085 = vmatpush1.xpose.msra.mxu0 %v1107
    %2086 = vmatprep.subr.mxu0 0.0
    %2087 = vmatpush1.xpose.msra.mxu0 %v1108
    %2088 = vmatprep.mubr.f32.mxu0 0.0
    %2089 = vmatmul.mubr.f32.gmra.mrb[0].mxu0 %v210
    %v2090 = vpop.f32.mrb[0].mxu0
    %v2091 = vadd.f32 0.0, %v2090
    %v2092 = vpop.f32.mrb[0].mxu0
    %v2093 = vadd.f32 0.0, %v2092
    %2094 = vdwg.mxu0
    %2095 = vmatprep.subr.mxu0 0.0
    %2096 = vmatpush1.xpose.msra.mxu0 %v596
    %2097 = vmatprep.subr.mxu0 0.0
    %2098 = vmatpush1.xpose.msra.mxu0 %v597
    %2099 = vmatprep.subr.mxu0 0.0
    %2100 = vmatpush1.xpose.msra.mxu0 %v598
    %2101 = vmatprep.subr.mxu0 0.0
    %2102 = vmatpush1.xpose.msra.mxu0 %v599
    %2103 = vmatprep.subr.mxu0 0.0
    %2104 = vmatpush1.xpose.msra.mxu0 %v600
    %2105 = vmatprep.subr.mxu0 0.0
    %2106 = vmatpush1.xpose.msra.mxu0 %v601
    %2107 = vmatprep.subr.mxu0 0.0
    %2108 = vmatpush1.xpose.msra.mxu0 %v602
    %2109 = vmatprep.subr.mxu0 0.0
    %2110 = vmatpush1.xpose.msra.mxu0 %v603
    %2111 = vmatprep.subr.mxu0 0.0
    %2112 = vmatpush1.xpose.msra.mxu0 %v604
    %2113 = vmatprep.subr.mxu0 0.0
    %2114 = vmatpush1.xpose.msra.mxu0 %v605
    %2115 = vmatprep.subr.mxu0 0.0
    %2116 = vmatpush1.xpose.msra.mxu0 %v606
    %2117 = vmatprep.subr.mxu0 0.0
    %2118 = vmatpush1.xpose.msra.mxu0 %v607
    %2119 = vmatprep.subr.mxu0 0.0
    %2120 = vmatpush1.xpose.msra.mxu0 %v608
    %2121 = vmatprep.subr.mxu0 0.0
    %2122 = vmatpush1.xpose.msra.mxu0 %v609
    %2123 = vmatprep.subr.mxu0 0.0
    %2124 = vmatpush1.xpose.msra.mxu0 %v610
    %2125 = vmatprep.subr.mxu0 0.0
    %2126 = vmatpush1.xpose.msra.mxu0 %v611
    %2127 = vmatprep.subr.mxu0 0.0
    %2128 = vmatpush1.xpose.msra.mxu0 %v612
    %2129 = vmatprep.subr.mxu0 0.0
    %2130 = vmatpush1.xpose.msra.mxu0 %v613
    %2131 = vmatprep.subr.mxu0 0.0
    %2132 = vmatpush1.xpose.msra.mxu0 %v614
    %2133 = vmatprep.subr.mxu0 0.0
    %2134 = vmatpush1.xpose.msra.mxu0 %v615
    %2135 = vmatprep.subr.mxu0 0.0
    %2136 = vmatpush1.xpose.msra.mxu0 %v616
    %2137 = vmatprep.subr.mxu0 0.0
    %2138 = vmatpush1.xpose.msra.mxu0 %v617
    %2139 = vmatprep.subr.mxu0 0.0
    %2140 = vmatpush1.xpose.msra.mxu0 %v618
    %2141 = vmatprep.subr.mxu0 0.0
    %2142 = vmatpush1.xpose.msra.mxu0 %v619
    %2143 = vmatprep.subr.mxu0 0.0
    %2144 = vmatpush1.xpose.msra.mxu0 %v620
    %2145 = vmatprep.subr.mxu0 0.0
    %2146 = vmatpush1.xpose.msra.mxu0 %v621
    %2147 = vmatprep.subr.mxu0 0.0
    %2148 = vmatpush1.xpose.msra.mxu0 %v622
    %2149 = vmatprep.subr.mxu0 0.0
    %2150 = vmatpush1.xpose.msra.mxu0 %v623
    %2151 = vmatprep.subr.mxu0 0.0
    %2152 = vmatpush1.xpose.msra.mxu0 %v624
    %2153 = vmatprep.subr.mxu0 0.0
    %2154 = vmatpush1.xpose.msra.mxu0 %v625
    %2155 = vmatprep.subr.mxu0 0.0
    %2156 = vmatpush1.xpose.msra.mxu0 %v626
    %2157 = vmatprep.subr.mxu0 0.0
    %2158 = vmatpush1.xpose.msra.mxu0 %v627
    %2159 = vmatprep.mubr.f32.mxu0 0.0
    %2160 = vmatmul.mubr.f32.gmra.mrb[0].mxu0 %v209
    %v2161 = vpop.f32.mrb[0].mxu0
    %v2162 = vadd.f32 %v2020, %v2161
    %v2163 = vpop.f32.mrb[0].mxu0
    %v2164 = vadd.f32 %v2022, %v2163
    %2165 = vdwg.mxu0
    %2166 = vmatprep.subr.mxu0 0.0
    %2167 = vmatpush1.xpose.msra.mxu0 %v628
    %2168 = vmatprep.subr.mxu0 0.0
    %2169 = vmatpush1.xpose.msra.mxu0 %v629
    %2170 = vmatprep.subr.mxu0 0.0
    %2171 = vmatpush1.xpose.msra.mxu0 %v630
    %2172 = vmatprep.subr.mxu0 0.0
    %2173 = vmatpush1.xpose.msra.mxu0 %v631
    %2174 = vmatprep.subr.mxu0 0.0
    %2175 = vmatpush1.xpose.msra.mxu0 %v632
    %2176 = vmatprep.subr.mxu0 0.0
    %2177 = vmatpush1.xpose.msra.mxu0 %v633
    %2178 = vmatprep.subr.mxu0 0.0
    %2179 = vmatpush1.xpose.msra.mxu0 %v634
    %2180 = vmatprep.subr.mxu0 0.0
    %2181 = vmatpush1.xpose.msra.mxu0 %v635
    %2182 = vmatprep.subr.mxu0 0.0
    %2183 = vmatpush1.xpose.msra.mxu0 %v636
    %2184 = vmatprep.subr.mxu0 0.0
    %2185 = vmatpush1.xpose.msra.mxu0 %v637
    %2186 = vmatprep.subr.mxu0 0.0
    %2187 = vmatpush1.xpose.msra.mxu0 %v638
    %2188 = vmatprep.subr.mxu0 0.0
    %2189 = vmatpush1.xpose.msra.mxu0 %v639
    %2190 = vmatprep.subr.mxu0 0.0
    %2191 = vmatpush1.xpose.msra.mxu0 %v640
    %2192 = vmatprep.subr.mxu0 0.0
    %2193 = vmatpush1.xpose.msra.mxu0 %v641
    %2194 = vmatprep.subr.mxu0 0.0
    %2195 = vmatpush1.xpose.msra.mxu0 %v642
    %2196 = vmatprep.subr.mxu0 0.0
    %2197 = vmatpush1.xpose.msra.mxu0 %v643
    %2198 = vmatprep.subr.mxu0 0.0
    %2199 = vmatpush1.xpose.msra.mxu0 %v644
    %2200 = vmatprep.subr.mxu0 0.0
    %2201 = vmatpush1.xpose.msra.mxu0 %v645
    %2202 = vmatprep.subr.mxu0 0.0
    %2203 = vmatpush1.xpose.msra.mxu0 %v646
    %2204 = vmatprep.subr.mxu0 0.0
    %2205 = vmatpush1.xpose.msra.mxu0 %v647
    %2206 = vmatprep.subr.mxu0 0.0
    %2207 = vmatpush1.xpose.msra.mxu0 %v648
    %2208 = vmatprep.subr.mxu0 0.0
    %2209 = vmatpush1.xpose.msra.mxu0 %v649
    %2210 = vmatprep.subr.mxu0 0.0
    %2211 = vmatpush1.xpose.msra.mxu0 %v650
    %2212 = vmatprep.subr.mxu0 0.0
    %2213 = vmatpush1.xpose.msra.mxu0 %v651
    %2214 = vmatprep.subr.mxu0 0.0
    %2215 = vmatpush1.xpose.msra.mxu0 %v652
    %2216 = vmatprep.subr.mxu0 0.0
    %2217 = vmatpush1.xpose.msra.mxu0 %v653
    %2218 = vmatprep.subr.mxu0 0.0
    %2219 = vmatpush1.xpose.msra.mxu0 %v654
    %2220 = vmatprep.subr.mxu0 0.0
    %2221 = vmatpush1.xpose.msra.mxu0 %v655
    %2222 = vmatprep.subr.mxu0 0.0
    %2223 = vmatpush1.xpose.msra.mxu0 %v656
    %2224 = vmatprep.subr.mxu0 0.0
    %2225 = vmatpush1.xpose.msra.mxu0 %v657
    %2226 = vmatprep.subr.mxu0 0.0
    %2227 = vmatpush1.xpose.msra.mxu0 %v658
    %2228 = vmatprep.subr.mxu0 0.0
    %2229 = vmatpush1.xpose.msra.mxu0 %v659
    %2230 = vmatprep.mubr.f32.mxu0 0.0
    %2231 = vmatmul.mubr.f32.gmra.mrb[0].mxu0 %v209
    %v2232 = vpop.f32.mrb[0].mxu0
    %v2233 = vadd.f32 %v2091, %v2232
    %v2234 = vpop.f32.mrb[0].mxu0
    %v2235 = vadd.f32 %v2093, %v2234
    %2236 = vdwg.mxu0
    %v2237 = vxor.u32 %v2162, 2147483648
    %v2238 = vxor.u32 %v2164, 2147483648
    %v2239 = vxor.u32 %v2233, 2147483648
    %v2240 = vxor.u32 %v2235, 2147483648
    %v2241 = vmul.f32 %v2237, 1.442695
    %v2242 = vpow.pop %v2241
    %v2243 = vmul.f32 %v2238, 1.442695
    %v2244 = vpow.pop %v2243
    %v2245 = vmul.f32 %v2239, 1.442695
    %v2246 = vpow.pop %v2245
    %v2247 = vmul.f32 %v2240, 1.442695
    %v2248 = vpow.pop %v2247
    %v2249 = vadd.f32 %v2242, 1.0
    %v2250 = vadd.f32 %v2244, 1.0
    %v2251 = vadd.f32 %v2246, 1.0
    %v2252 = vadd.f32 %v2248, 1.0
    %v2253 = vrcp.pop %v2249
    %v2254 = vmul.f32 1.0, %v2253
    %v2255 = vrcp.pop %v2250
    %v2256 = vmul.f32 1.0, %v2255
    %v2257 = vrcp.pop %v2251
    %v2258 = vmul.f32 1.0, %v2257
    %v2259 = vrcp.pop %v2252
    %v2260 = vmul.f32 1.0, %v2259
    %v2265 = vcombine.low %v2254, %v2256
    %v2266 = vcombine.low %v2258, %v2260
    %v2268 = vunpack.c.l.s4 1966171168
    %v2269 = vunpack.c.0.s8 %v2268
    %v2270 = vlaneseq
    %v2271 = vshrl.u32 %v2270, 7
    %v2272 = vsub.s32 %v2269, %v2271
    %v2273 = vrot.slane %v2265, %v2272
    %v2275 = vunpack.c.l.s4 1966171168
    %v2276 = vunpack.c.0.s8 %v2275
    %v2277 = vlaneseq
    %v2278 = vshrl.u32 %v2277, 7
    %v2279 = vsub.s32 %v2276, %v2278
    %v2280 = vrot.slane %v2266, %v2279
    %v2281 = vcombine.low %v2273, %v2280
    %v2283 = vunpack.c.l.s4 1966171168
    %v2284 = vunpack.c.0.s8 %v2283
    %v2285 = vlaneseq
    %v2286 = vshrl.u32 %v2285, 7
    %v2287 = vsub.s32 %v2284, %v2286
    %v2288 = vrot.slane %v2281, %v2287
    %v2290 = vlaneseq
    %vm2291 = vcmp.ge.s32.totalorder %v2290, 0
    %vm2292 = vcmp.lt.s32.totalorder %v2290, 512
    %vm2293 = vmand %vm2291, %vm2292
    %2294 = vst.msk [vmem:[#allocation9] sm:$0xf] %vm2293, %v2288
    %v2295 = vsub.f32 %v65, %v129
    %v2296 = vsub.f32 %v66, %v130
    %v2297 = vsub.f32 %v67, %v131
    %v2298 = vsub.f32 %v68, %v132
    %v2299 = vsub.f32 %v69, %v133
    %v2300 = vsub.f32 %v70, %v134
    %v2301 = vsub.f32 %v71, %v135
    %v2302 = vsub.f32 %v72, %v136
    %v2303 = vsub.f32 %v73, %v137
    %v2304 = vsub.f32 %v74, %v138
    %v2305 = vsub.f32 %v75, %v139
    %v2306 = vsub.f32 %v76, %v140
    %v2307 = vsub.f32 %v77, %v141
    %v2308 = vsub.f32 %v78, %v142
    %v2309 = vsub.f32 %v79, %v143
    %v2310 = vsub.f32 %v80, %v144
    %v2311 = vsub.f32 %v81, %v145
    %v2312 = vsub.f32 %v82, %v146
    %v2313 = vsub.f32 %v83, %v147
    %v2314 = vsub.f32 %v84, %v148
    %v2315 = vsub.f32 %v85, %v149
    %v2316 = vsub.f32 %v86, %v150
    %v2317 = vsub.f32 %v87, %v151
    %v2318 = vsub.f32 %v88, %v152
    %v2319 = vsub.f32 %v89, %v153
    %v2320 = vsub.f32 %v90, %v154
    %v2321 = vsub.f32 %v91, %v155
    %v2322 = vsub.f32 %v92, %v156
    %v2323 = vsub.f32 %v93, %v157
    %v2324 = vsub.f32 %v94, %v158
    %v2325 = vsub.f32 %v95, %v159
    %v2326 = vsub.f32 %v96, %v160
    %v2327 = vsub.f32 %v97, %v161
    %v2328 = vsub.f32 %v98, %v162
    %v2329 = vsub.f32 %v99, %v163
    %v2330 = vsub.f32 %v100, %v164
    %v2331 = vsub.f32 %v101, %v165
    %v2332 = vsub.f32 %v102, %v166
    %v2333 = vsub.f32 %v103, %v167
    %v2334 = vsub.f32 %v104, %v168
    %v2335 = vsub.f32 %v105, %v169
    %v2336 = vsub.f32 %v106, %v170
    %v2337 = vsub.f32 %v107, %v171
    %v2338 = vsub.f32 %v108, %v172
    %v2339 = vsub.f32 %v109, %v173
    %v2340 = vsub.f32 %v110, %v174
    %v2341 = vsub.f32 %v111, %v175
    %v2342 = vsub.f32 %v112, %v176
    %v2343 = vsub.f32 %v113, %v177
    %v2344 = vsub.f32 %v114, %v178
    %v2345 = vsub.f32 %v115, %v179
    %v2346 = vsub.f32 %v116, %v180
    %v2347 = vsub.f32 %v117, %v181
    %v2348 = vsub.f32 %v118, %v182
    %v2349 = vsub.f32 %v119, %v183
    %v2350 = vsub.f32 %v120, %v184
    %v2351 = vsub.f32 %v121, %v185
    %v2352 = vsub.f32 %v122, %v186
    %v2353 = vsub.f32 %v123, %v187
    %v2354 = vsub.f32 %v124, %v188
    %v2355 = vsub.f32 %v125, %v189
    %v2356 = vsub.f32 %v126, %v190
    %v2357 = vsub.f32 %v127, %v191
    %v2358 = vsub.f32 %v128, %v192
    %v2359 = vmul.f32 %v1826, %v2295
    %v2360 = vmul.f32 %v1828, %v2296
    %v2361 = vmul.f32 %v1830, %v2297
    %v2362 = vmul.f32 %v1832, %v2298
    %v2363 = vmul.f32 %v1834, %v2299
    %v2364 = vmul.f32 %v1836, %v2300
    %v2365 = vmul.f32 %v1838, %v2301
    %v2366 = vmul.f32 %v1840, %v2302
    %v2367 = vmul.f32 %v1842, %v2303
    %v2368 = vmul.f32 %v1844, %v2304
    %v2369 = vmul.f32 %v1846, %v2305
    %v2370 = vmul.f32 %v1848, %v2306
    %v2371 = vmul.f32 %v1850, %v2307
    %v2372 = vmul.f32 %v1852, %v2308
    %v2373 = vmul.f32 %v1854, %v2309
    %v2374 = vmul.f32 %v1856, %v2310
    %v2375 = vmul.f32 %v1858, %v2311
    %v2376 = vmul.f32 %v1860, %v2312
    %v2377 = vmul.f32 %v1862, %v2313
    %v2378 = vmul.f32 %v1864, %v2314
    %v2379 = vmul.f32 %v1866, %v2315
    %v2380 = vmul.f32 %v1868, %v2316
    %v2381 = vmul.f32 %v1870, %v2317
    %v2382 = vmul.f32 %v1872, %v2318
    %v2383 = vmul.f32 %v1874, %v2319
    %v2384 = vmul.f32 %v1876, %v2320
    %v2385 = vmul.f32 %v1878, %v2321
    %v2386 = vmul.f32 %v1880, %v2322
    %v2387 = vmul.f32 %v1882, %v2323
    %v2388 = vmul.f32 %v1884, %v2324
    %v2389 = vmul.f32 %v1886, %v2325
    %v2390 = vmul.f32 %v1888, %v2326
    %v2391 = vmul.f32 %v1890, %v2327
    %v2392 = vmul.f32 %v1892, %v2328
    %v2393 = vmul.f32 %v1894, %v2329
    %v2394 = vmul.f32 %v1896, %v2330
    %v2395 = vmul.f32 %v1898, %v2331
    %v2396 = vmul.f32 %v1900, %v2332
    %v2397 = vmul.f32 %v1902, %v2333
    %v2398 = vmul.f32 %v1904, %v2334
    %v2399 = vmul.f32 %v1906, %v2335
    %v2400 = vmul.f32 %v1908, %v2336
    %v2401 = vmul.f32 %v1910, %v2337
    %v2402 = vmul.f32 %v1912, %v2338
    %v2403 = vmul.f32 %v1914, %v2339
    %v2404 = vmul.f32 %v1916, %v2340
    %v2405 = vmul.f32 %v1918, %v2341
    %v2406 = vmul.f32 %v1920, %v2342
    %v2407 = vmul.f32 %v1922, %v2343
    %v2408 = vmul.f32 %v1924, %v2344
    %v2409 = vmul.f32 %v1926, %v2345
    %v2410 = vmul.f32 %v1928, %v2346
    %v2411 = vmul.f32 %v1930, %v2347
    %v2412 = vmul.f32 %v1932, %v2348
    %v2413 = vmul.f32 %v1934, %v2349
    %v2414 = vmul.f32 %v1936, %v2350
    %v2415 = vmul.f32 %v1938, %v2351
    %v2416 = vmul.f32 %v1940, %v2352
    %v2417 = vmul.f32 %v1942, %v2353
    %v2418 = vmul.f32 %v1944, %v2354
    %v2419 = vmul.f32 %v1946, %v2355
    %v2420 = vmul.f32 %v1948, %v2356
    %v2421 = vmul.f32 %v1950, %v2357
    %v2422 = vmul.f32 %v1952, %v2358
    %v2423 = vadd.f32 %v129, %v2359
    %v2424 = vadd.f32 %v130, %v2360
    %v2425 = vadd.f32 %v131, %v2361
    %v2426 = vadd.f32 %v132, %v2362
    %v2427 = vadd.f32 %v133, %v2363
    %v2428 = vadd.f32 %v134, %v2364
    %v2429 = vadd.f32 %v135, %v2365
    %v2430 = vadd.f32 %v136, %v2366
    %v2431 = vadd.f32 %v137, %v2367
    %v2432 = vadd.f32 %v138, %v2368
    %v2433 = vadd.f32 %v139, %v2369
    %v2434 = vadd.f32 %v140, %v2370
    %v2435 = vadd.f32 %v141, %v2371
    %v2436 = vadd.f32 %v142, %v2372
    %v2437 = vadd.f32 %v143, %v2373
    %v2438 = vadd.f32 %v144, %v2374
    %v2439 = vadd.f32 %v145, %v2375
    %v2440 = vadd.f32 %v146, %v2376
    %v2441 = vadd.f32 %v147, %v2377
    %v2442 = vadd.f32 %v148, %v2378
    %v2443 = vadd.f32 %v149, %v2379
    %v2444 = vadd.f32 %v150, %v2380
    %v2445 = vadd.f32 %v151, %v2381
    %v2446 = vadd.f32 %v152, %v2382
    %v2447 = vadd.f32 %v153, %v2383
    %v2448 = vadd.f32 %v154, %v2384
    %v2449 = vadd.f32 %v155, %v2385
    %v2450 = vadd.f32 %v156, %v2386
    %v2451 = vadd.f32 %v157, %v2387
    %v2452 = vadd.f32 %v158, %v2388
    %v2453 = vadd.f32 %v159, %v2389
    %v2454 = vadd.f32 %v160, %v2390
    %v2455 = vadd.f32 %v161, %v2391
    %v2456 = vadd.f32 %v162, %v2392
    %v2457 = vadd.f32 %v163, %v2393
    %v2458 = vadd.f32 %v164, %v2394
    %v2459 = vadd.f32 %v165, %v2395
    %v2460 = vadd.f32 %v166, %v2396
    %v2461 = vadd.f32 %v167, %v2397
    %v2462 = vadd.f32 %v168, %v2398
    %v2463 = vadd.f32 %v169, %v2399
    %v2464 = vadd.f32 %v170, %v2400
    %v2465 = vadd.f32 %v171, %v2401
    %v2466 = vadd.f32 %v172, %v2402
    %v2467 = vadd.f32 %v173, %v2403
    %v2468 = vadd.f32 %v174, %v2404
    %v2469 = vadd.f32 %v175, %v2405
    %v2470 = vadd.f32 %v176, %v2406
    %v2471 = vadd.f32 %v177, %v2407
    %v2472 = vadd.f32 %v178, %v2408
    %v2473 = vadd.f32 %v179, %v2409
    %v2474 = vadd.f32 %v180, %v2410
    %v2475 = vadd.f32 %v181, %v2411
    %v2476 = vadd.f32 %v182, %v2412
    %v2477 = vadd.f32 %v183, %v2413
    %v2478 = vadd.f32 %v184, %v2414
    %v2479 = vadd.f32 %v185, %v2415
    %v2480 = vadd.f32 %v186, %v2416
    %v2481 = vadd.f32 %v187, %v2417
    %v2482 = vadd.f32 %v188, %v2418
    %v2483 = vadd.f32 %v189, %v2419
    %v2484 = vadd.f32 %v190, %v2420
    %v2485 = vadd.f32 %v191, %v2421
    %v2486 = vadd.f32 %v192, %v2422
    %2487 = vst [vmem:[#allocation8] sm:$0xff] %v2423
    %2488 = vst [vmem:[#allocation8 + $0x8] sm:$0xff] %v2424
    %2489 = vst [vmem:[#allocation8 + $0x10] sm:$0xff] %v2425
    %2490 = vst [vmem:[#allocation8 + $0x18] sm:$0xff] %v2426
    %2491 = vst [vmem:[#allocation8 + $0x20] sm:$0xff] %v2427
    %2492 = vst [vmem:[#allocation8 + $0x28] sm:$0xff] %v2428
    %2493 = vst [vmem:[#allocation8 + $0x30] sm:$0xff] %v2429
    %2494 = vst [vmem:[#allocation8 + $0x38] sm:$0xff] %v2430
    %2495 = vst [vmem:[#allocation8 + $0x40] sm:$0xff] %v2431
    %2496 = vst [vmem:[#allocation8 + $0x48] sm:$0xff] %v2432
    %2497 = vst [vmem:[#allocation8 + $0x50] sm:$0xff] %v2433
    %2498 = vst [vmem:[#allocation8 + $0x58] sm:$0xff] %v2434
    %2499 = vst [vmem:[#allocation8 + $0x60] sm:$0xff] %v2435
    %2500 = vst [vmem:[#allocation8 + $0x68] sm:$0xff] %v2436
    %2501 = vst [vmem:[#allocation8 + $0x70] sm:$0xff] %v2437
    %2502 = vst [vmem:[#allocation8 + $0x78] sm:$0xff] %v2438
    %2503 = vst [vmem:[#allocation8 + $0x80] sm:$0xff] %v2439
    %2504 = vst [vmem:[#allocation8 + $0x88] sm:$0xff] %v2440
    %2505 = vst [vmem:[#allocation8 + $0x90] sm:$0xff] %v2441
    %2506 = vst [vmem:[#allocation8 + $0x98] sm:$0xff] %v2442
    %2507 = vst [vmem:[#allocation8 + $0xa0] sm:$0xff] %v2443
    %2508 = vst [vmem:[#allocation8 + $0xa8] sm:$0xff] %v2444
    %2509 = vst [vmem:[#allocation8 + $0xb0] sm:$0xff] %v2445
    %2510 = vst [vmem:[#allocation8 + $0xb8] sm:$0xff] %v2446
    %2511 = vst [vmem:[#allocation8 + $0xc0] sm:$0xff] %v2447
    %2512 = vst [vmem:[#allocation8 + $0xc8] sm:$0xff] %v2448
    %2513 = vst [vmem:[#allocation8 + $0xd0] sm:$0xff] %v2449
    %2514 = vst [vmem:[#allocation8 + $0xd8] sm:$0xff] %v2450
    %2515 = vst [vmem:[#allocation8 + $0xe0] sm:$0xff] %v2451
    %2516 = vst [vmem:[#allocation8 + $0xe8] sm:$0xff] %v2452
    %2517 = vst [vmem:[#allocation8 + $0xf0] sm:$0xff] %v2453
    %2518 = vst [vmem:[#allocation8 + $0xf8] sm:$0xff] %v2454
    %2519 = vst [vmem:[#allocation8 + $0x100] sm:$0xff] %v2455
    %2520 = vst [vmem:[#allocation8 + $0x108] sm:$0xff] %v2456
    %2521 = vst [vmem:[#allocation8 + $0x110] sm:$0xff] %v2457
    %2522 = vst [vmem:[#allocation8 + $0x118] sm:$0xff] %v2458
    %2523 = vst [vmem:[#allocation8 + $0x120] sm:$0xff] %v2459
    %2524 = vst [vmem:[#allocation8 + $0x128] sm:$0xff] %v2460
    %2525 = vst [vmem:[#allocation8 + $0x130] sm:$0xff] %v2461
    %2526 = vst [vmem:[#allocation8 + $0x138] sm:$0xff] %v2462
    %2527 = vst [vmem:[#allocation8 + $0x140] sm:$0xff] %v2463
    %2528 = vst [vmem:[#allocation8 + $0x148] sm:$0xff] %v2464
    %2529 = vst [vmem:[#allocation8 + $0x150] sm:$0xff] %v2465
    %2530 = vst [vmem:[#allocation8 + $0x158] sm:$0xff] %v2466
    %2531 = vst [vmem:[#allocation8 + $0x160] sm:$0xff] %v2467
    %2532 = vst [vmem:[#allocation8 + $0x168] sm:$0xff] %v2468
    %2533 = vst [vmem:[#allocation8 + $0x170] sm:$0xff] %v2469
    %2534 = vst [vmem:[#allocation8 + $0x178] sm:$0xff] %v2470
    %2535 = vst [vmem:[#allocation8 + $0x180] sm:$0xff] %v2471
    %2536 = vst [vmem:[#allocation8 + $0x188] sm:$0xff] %v2472
    %2537 = vst [vmem:[#allocation8 + $0x190] sm:$0xff] %v2473
    %2538 = vst [vmem:[#allocation8 + $0x198] sm:$0xff] %v2474
    %2539 = vst [vmem:[#allocation8 + $0x1a0] sm:$0xff] %v2475
    %2540 = vst [vmem:[#allocation8 + $0x1a8] sm:$0xff] %v2476
    %2541 = vst [vmem:[#allocation8 + $0x1b0] sm:$0xff] %v2477
    %2542 = vst [vmem:[#allocation8 + $0x1b8] sm:$0xff] %v2478
    %2543 = vst [vmem:[#allocation8 + $0x1c0] sm:$0xff] %v2479
    %2544 = vst [vmem:[#allocation8 + $0x1c8] sm:$0xff] %v2480
    %2545 = vst [vmem:[#allocation8 + $0x1d0] sm:$0xff] %v2481
    %2546 = vst [vmem:[#allocation8 + $0x1d8] sm:$0xff] %v2482
    %2547 = vst [vmem:[#allocation8 + $0x1e0] sm:$0xff] %v2483
    %2548 = vst [vmem:[#allocation8 + $0x1e8] sm:$0xff] %v2484
    %2549 = vst [vmem:[#allocation8 + $0x1f0] sm:$0xff] %v2485
    %2550 = vst [vmem:[#allocation8 + $0x1f8] sm:$0xff] %v2486
    // Predicated region
    $region34: #{tpu_custom_call.1} parent=1 // pred_check
      _
    $region35: #{tpu_custom_call.1} parent=1 // pred_check_branch
      %2552 = sbr.rel (0) target = $region37
    $region36: #{tpu_custom_call.1} parent=1 // pred_region
      %s2554 = ssub.s32 8192, 8192
      %2555 = vsyncadd [#allocation4], %s2554
      %s2556 = sshll.u32 [#allocation8], 4
      %s2557 = int_to_ptr.vmem [resolvable:$true] %s2556
      %2562 = dma.vmem_to_hbm [thread:$0]  %s2557, 8192, %s5, [#allocation4], 128, 128, 8
    $region37: #{tpu_custom_call.1} parent=1 // pred_fallthru
      _
    // Predicated region
    $region38: #{tpu_custom_call.1} parent=1 // pred_check
      _
    $region39: #{tpu_custom_call.1} parent=1 // pred_check_branch
      %2564 = sbr.rel (0) target = $region41
    $region40: #{tpu_custom_call.1} parent=1 // pred_region
      %s2566 = ssub.s32 64, 64
      %2567 = vsyncadd [#allocation10], %s2566
      %s2569 = sshll.u32 [#allocation9], 4
      %s2570 = int_to_ptr.vmem [resolvable:$true] %s2569
      %2572 = dma.vmem_to_hbm [thread:$0]  %s2570, 64, %s6, [#allocation10]
    $region41: #{tpu_custom_call.1} parent=1 // pred_fallthru
      _
    // Predicated region
    $region42: #{tpu_custom_call.1} parent=1 // pred_check
      _
    $region43: #{tpu_custom_call.1} parent=1 // pred_check_branch
      %2574 = sbr.rel (0) target = $region45
    $region44: #{tpu_custom_call.1} parent=1 // pred_region
      %2575 = dma.done [#allocation4], 8192
    $region45: #{tpu_custom_call.1} parent=1 // pred_fallthru
      _
    // Predicated region
    $region46: #{tpu_custom_call.1} parent=1 // pred_check
      _
    $region47: #{tpu_custom_call.1} parent=1 // pred_check_branch
      %2577 = sbr.rel (0) target = $region49
    $region48: #{tpu_custom_call.1} parent=1 // pred_region
      %2578 = dma.done [#allocation10], 64
    $region49: #{tpu_custom_call.1} parent=1 // pred_fallthru
      _
    %2579 = vsyncpa [#allocation3], 1
    %2580 = vsyncpa [#allocation6], 1
    %2581 = vsyncpa [#allocation4], 1
    %2582 = vsyncpa [#allocation10], 1

</llo_original>
